<compile_context>
chip_gen: v7x
topology: tpu7x:2x2x1
jax: 0.10.0
libtpu: 0.0.40
codegen_flags: <defaults>
</compile_context>

<pallas_src>
import jax
import jax.numpy as jnp
from jax import lax
from jax.experimental import pallas as pl
from jax.experimental.pallas import tpu as pltpu

# ---- model configuration (small shapes consistent with the module) ----
F_GCN = (5, 16, 8)      # f_gcn[0] must equal CHANNELS + 1 = 5
F_ATTEN = (8, 8)
N_UNITS = (16, 16, 8)   # n_units[0] == ld_hs
LE_HS = 16
LD_HS = 16
STATE_DIM = 4
CHANNELS = 4            # hard-coded default in EGCN.__init__
BS = 8
THRESHOLD = 1e-6
BN_EPS = 1e-5

N_EGCN = len(F_GCN) - 1
N_MLP = len(N_UNITS) - 1
WC = BS * CHANNELS      # wide-layout edge columns: E[i, j*C+k]

# column layout of the fused E-only RHS matrix "wall":
#   [ Gm block layer0 | Gm block layer1 | Ech col layer0 | Ech col layer1 ]
GM_W = [BS * F_ATTEN[li] for li in range(N_EGCN)]
GM_OFF = []
_off = 0
for _w in GM_W:
    GM_OFF.append(_off)
    _off += _w
ECH_OFF = []
for _ in range(N_EGCN):
    ECH_OFF.append(_off)
    _off += BS
WALL_W = _off           # 144

# ---------------------------------------------------------------------------
# Packed-buffer layouts (static, shared by host-side packer and kernel)
# ---------------------------------------------------------------------------

MAT_ENTRIES = [("wall", WC, WALL_W)]
for _li in range(N_EGCN):
    MAT_ENTRIES.append((f"w{_li}", F_GCN[_li + 1], F_GCN[_li]))     # Linear weight
MAT_ENTRIES += [
    ("wencx",  4 * LE_HS, F_GCN[-1]),             # encoder w_ih cols for EGCN-h part
    ("wencsh", 4 * LE_HS, STATE_DIM + LE_HS),     # encoder [w_ih(state cols) | w_hh]
    ("wdecx",  4 * LD_HS, LE_HS),                 # decoder w_ih
    ("wdech",  4 * LD_HS, LD_HS),                 # decoder w_hh
    ("wmlp",   N_UNITS[-1], N_UNITS[0]),          # collapsed MLP weight W1 @ W0
    ("schan",  WC, CHANNELS),                     # channel selector (tiling / sums)
    ("dmask",  BS, WC),                           # diagonal (i==j) mask, wide layout
]

VEC_ENTRIES = [("call", 1, WALL_W)]               # beta contribution to P (constant row)
for _li in range(N_EGCN):
    VEC_ENTRIES += [
        (f"wb{_li}",  1, F_GCN[_li + 1]),         # Linear bias, pre-scaled by CHANNELS
        (f"bn2g{_li}", 1, F_GCN[_li + 1]),
        (f"bn2b{_li}", 1, F_GCN[_li + 1]),
    ]
VEC_ENTRIES += [("benc", 1, 4 * LE_HS), ("bdec", 1, 4 * LD_HS),
                ("bmlp", 1, N_UNITS[-1])]


def _make_layout(entries):
    # rows padded to multiples of 8 so all sublane slices are aligned
    layout, r, width = {}, 0, 0
    for name, nr, nc in entries:
        layout[name] = (r, nr, nc)
        r += ((nr + 7) // 8) * 8
        width = max(width, nc)
    return layout, r, width


MAT_LAYOUT, MAT_ROWS, MAT_W = _make_layout(MAT_ENTRIES)
VEC_LAYOUT, VEC_ROWS, VEC_W = _make_layout(VEC_ENTRIES)

# input buffer column layout; [state | le_h0] are contiguous so the encoder's
# hoisted partial-gate matmul needs no concat.  Last row: x_ flattened (1, bs*C).
IN_X = 0
IN_SH = 8                       # cols  8..28 : [state(4) | le_h0(16)]
IN_LEC = 32
IN_LDH = 48
IN_LDC = 64
IN_W = 80
IN_ROWS = BS + 1


# ---------------------------------------------------------------------------
# Kernel
# ---------------------------------------------------------------------------

def scalenet_kernel(in_ref, mat_ref, vec_ref, out_ref):
    f32 = jnp.float32

    def mat(name):
        r0, nr, nc = MAT_LAYOUT[name]
        return mat_ref[r0:r0 + nr, 0:nc]

    def vec(name):
        r0, _, nc = VEC_LAYOUT[name]
        return vec_ref[r0:r0 + 1, 0:nc]

    def dot_t(a, b):   # a @ b.T  (contract last dims), f32 accumulate
        return lax.dot_general(a, b, (((1,), (1,)), ((), ())),
                               preferred_element_type=f32)

    def sigmoid(z):    # exact identity; tanh runs on the EUP slot
        return 0.5 * (jnp.tanh(0.5 * z) + 1.0)

    # ----- unpack activations -----
    x      = in_ref[0:BS, IN_X:IN_X + F_GCN[0]]                  # (bs, 5)
    x_part = in_ref[0:BS, IN_X:IN_X + CHANNELS]                  # (bs, C)
    z_sh   = in_ref[0:BS, IN_SH:IN_SH + STATE_DIM + LE_HS]       # [state | le_h0]
    le_c0  = in_ref[0:BS, IN_LEC:IN_LEC + LE_HS]
    ld_h0  = in_ref[0:BS, IN_LDH:IN_LDH + LD_HS]
    ld_c0  = in_ref[0:BS, IN_LDC:IN_LDC + LD_HS]
    xflat  = in_ref[BS:BS + 1, 0:WC]                             # x_[j,k] at j*C+k

    schan  = mat("schan")                                        # (bs*C, C)
    dmaskb = mat("dmask") > 0.5                                  # (bs, bs*C) bool

    # ----- hoisted h-independent LSTM partial gates -----
    penc = dot_t(z_sh, mat("wencsh")) + vec("benc")              # (bs, 4*le_hs)
    pdec = dot_t(ld_h0, mat("wdech")) + vec("bdec")              # (bs, 4*ld_hs)

    # ----- ScaleNet.get_edge, wide 2-D layout: E[i, j*C+k] = |x_[i,k]-x_[j,k]| -----
    x_m = dot_t(x_part, schan)                                   # tile along j via MXU
    E = jnp.abs(x_m - xflat)                                     # (bs, bs*C)
    E_D = jnp.dot(E, schan, preferred_element_type=f32)          # (bs, C): sum over j
    diag = jnp.where(E_D > THRESHOLD, E_D, jnp.ones_like(E_D))
    E = jnp.where(dmaskb, dot_t(diag, schan), E)                 # replace diagonal

    # ----- BatchNorm1d(channels) stats over (i, j) -- hoisted, shared by all
    #       EGCN layers (training-mode batch stats, biased variance) -----
    inv_n = 1.0 / float(BS * BS)
    m = jnp.dot(jnp.sum(E, axis=0, keepdims=True), schan,
                preferred_element_type=f32) * inv_n              # (1, C)
    d = E - dot_t(m, schan)
    v = jnp.dot(jnp.sum(d * d, axis=0, keepdims=True), schan,
                preferred_element_type=f32) * inv_n              # (1, C)
    E_norm = d * dot_t(lax.rsqrt(v + BN_EPS), schan)             # (bs, bs*C)

    # ----- all E-only attention work for BOTH layers in ONE wide matmul -----
    # P = [Gm0 | Gm1 | Ech0 | Ech1]; the per-layer BN affine is folded into
    # wall (gamma as row scale) and call (beta constant row) host-side.
    P = jnp.dot(E_norm, mat("wall"), preferred_element_type=f32) + vec("call")

    Ms = []
    for li in range(N_EGCN):
        Gm = P[:, GM_OFF[li]:GM_OFF[li] + GM_W[li]]              # (bs, bs*F_att)
        A = dot_t(Gm, Gm)                                        # == sum_b E_b Wa Wa^T E_b^T
        A = A - jnp.max(A, axis=1, keepdims=True)
        Ae = jnp.exp(A)
        Asm = Ae * pl.reciprocal(jnp.sum(Ae, axis=1, keepdims=True), approx=True)
        Ech = P[:, ECH_OFF[li]:ECH_OFF[li] + BS]                 # sum_k E_l[:, :, k]
        Ms.append(Asm * Ech)                                     # sum_k A_adj[:,:,k]

    # ----- EGCN h-chain (only the h-dependent work remains in the loop) -----
    h = x
    for li in range(N_EGCN):
        Hx = jnp.dot(Ms[li], h, preferred_element_type=f32)      # (bs, f_in)
        Hpre = dot_t(Hx, mat(f"w{li}")) + vec(f"wb{li}")         # bias pre-scaled by C
        m2 = jnp.mean(Hpre, axis=0, keepdims=True)
        v2 = jnp.mean((Hpre - m2) ** 2, axis=0, keepdims=True)
        h = jnp.tanh((Hpre - m2) * lax.rsqrt(v2 + BN_EPS)
                     * vec(f"bn2g{li}") + vec(f"bn2b{li}"))

    # ----- LSTM encoder (PyTorch LSTMCell gate order i,f,g,o) -----
    ge = dot_t(h, mat("wencx")) + penc
    ig = sigmoid(ge[:, 0:LE_HS]);            fg = sigmoid(ge[:, LE_HS:2 * LE_HS])
    gg = jnp.tanh(ge[:, 2 * LE_HS:3 * LE_HS]); og = sigmoid(ge[:, 3 * LE_HS:4 * LE_HS])
    cn = fg * le_c0 + ig * gg
    le_h = og * jnp.tanh(cn)

    # ----- LSTM decoder -----
    gd = dot_t(le_h, mat("wdecx")) + pdec
    id_ = sigmoid(gd[:, 0:LD_HS]);            fd = sigmoid(gd[:, LD_HS:2 * LD_HS])
    gdd = jnp.tanh(gd[:, 2 * LD_HS:3 * LD_HS]); od = sigmoid(gd[:, 3 * LD_HS:4 * LD_HS])
    cd = fd * ld_c0 + id_ * gdd
    y = jnp.maximum(od * jnp.tanh(cd), 0.0)

    # ----- collapsed MLP (no inter-layer activation) + final relu -----
    y = jnp.maximum(dot_t(y, mat("wmlp")) + vec("bmlp"), 0.0)

    out_ref[...] = y.astype(out_ref.dtype)


# ---------------------------------------------------------------------------
# Host-side packing
# ---------------------------------------------------------------------------

def _assemble(layout, total_rows, width, tensors):
    buf = jnp.zeros((total_rows, width), jnp.float32)
    for name, (r0, nr, nc) in layout.items():
        buf = buf.at[r0:r0 + nr, 0:nc].set(tensors[name].astype(jnp.float32))
    return buf


def pack_params(params):
    """Pack the flat parameter list (init_params order) into 2 f32 buffers."""
    # constant selectors for the wide-layout E math
    r = jnp.arange(WC)
    schan = (r[:, None] % CHANNELS == jnp.arange(CHANNELS)[None, :]).astype(jnp.float32)
    tj = (r[:, None] // CHANNELS == jnp.arange(BS)[None, :]).astype(jnp.float32)
    dmask = (jnp.arange(BS)[:, None] == (r[None, :] // CHANNELS)).astype(jnp.float32)

    t = {"schan": schan, "dmask": dmask}
    p = 0
    gm_cols, ech_cols, gm_consts, ech_consts = [], [], [], []
    for li in range(N_EGCN):
        w_atten, bn_g, bn_b, w_w, w_b, bn2_g, bn2_b = params[p:p + 7]
        p += 7
        t[f"w{li}"] = w_w
        t[f"wb{li}"] = float(CHANNELS) * w_b             # bias summed C times in get_h
        t[f"bn2g{li}"] = bn2_g
        t[f"bn2b{li}"] = bn2_b
        # fold BN(E) affine into the fused E-only RHS matrix
        g_col = jnp.tile(bn_g, (1, BS)).reshape(WC, 1)   # gamma per wide column
        b_row = jnp.tile(bn_b, (1, BS))                  # beta,  (1, bs*C)
        wblk = jnp.kron(jnp.eye(BS, dtype=jnp.float32), w_atten)   # blockdiag(w_atten)
        gm_cols.append(g_col * wblk)
        ech_cols.append(g_col * tj)
        gm_consts.append(b_row @ wblk)
        ech_consts.append(b_row @ tj)
    t["wall"] = jnp.concatenate(gm_cols + ech_cols, axis=1)        # (bs*C, WALL_W)
    t["call"] = jnp.concatenate(gm_consts + ech_consts, axis=1)    # (1, WALL_W)

    w_ih_e, w_hh_e, b_ih_e, b_hh_e = params[p:p + 4]; p += 4
    t["wencx"] = w_ih_e[:, 0:F_GCN[-1]]
    t["wencsh"] = jnp.concatenate([w_ih_e[:, F_GCN[-1]:], w_hh_e], axis=1)
    t["benc"] = b_ih_e + b_hh_e
    w_ih_d, w_hh_d, b_ih_d, b_hh_d = params[p:p + 4]; p += 4
    t["wdecx"] = w_ih_d
    t["wdech"] = w_hh_d
    t["bdec"] = b_ih_d + b_hh_d

    # collapse the MLP block (exact: no inter-layer activation)
    Wm, bm = None, None
    for li in range(N_MLP):
        w, b = params[p], params[p + 1]; p += 2
        if Wm is None:
            Wm, bm = w, b
        else:
            Wm = w @ Wm
            bm = bm @ w.T + b
    t["wmlp"] = Wm
    t["bmlp"] = bm

    mat_buf = _assemble(MAT_LAYOUT, MAT_ROWS, MAT_W, t)
    vec_buf = _assemble(VEC_LAYOUT, VEC_ROWS, VEC_W, t)
    return mat_buf, vec_buf


def _pack_inputs(x, state, le_h0, le_c0, ld_h0, ld_c0):
    top = jnp.zeros((BS, IN_W), jnp.float32)
    top = top.at[:, IN_X:IN_X + F_GCN[0]].set(x)
    top = top.at[:, IN_SH:IN_SH + STATE_DIM].set(state)
    top = top.at[:, IN_SH + STATE_DIM:IN_SH + STATE_DIM + LE_HS].set(le_h0)
    top = top.at[:, IN_LEC:IN_LEC + LE_HS].set(le_c0)
    top = top.at[:, IN_LDH:IN_LDH + LD_HS].set(ld_h0)
    top = top.at[:, IN_LDC:IN_LDC + LD_HS].set(ld_c0)
    xflat = x[:, :CHANNELS].reshape(1, WC)
    bottom = jnp.zeros((1, IN_W), jnp.float32).at[:, 0:WC].set(xflat)
    return jnp.concatenate([top, bottom], axis=0)                   # (bs+1, 80)


# ---------------------------------------------------------------------------
# Parameter init (matches the PyTorch module's initializers)
# ---------------------------------------------------------------------------

def init_params(key):
    keys = iter(jax.random.split(key, 64))

    def unif(shape, bound):
        return jax.random.uniform(next(keys), shape, jnp.float32, -bound, bound)

    params = []
    for li in range(N_EGCN):
        f_in, f_out, f_att = F_GCN[li], F_GCN[li + 1], F_ATTEN[li]
        b_att = 1.414 * (6.0 / (CHANNELS + f_att)) ** 0.5        # xavier_uniform gain=1.414
        b_lin = 1.0 / f_in ** 0.5                                # nn.Linear default
        params += [
            unif((CHANNELS, f_att), b_att),                      # w_atten
            jnp.ones((1, CHANNELS), jnp.float32),                # bn  gamma
            jnp.zeros((1, CHANNELS), jnp.float32),               # bn  beta
            unif((f_out, f_in), b_lin),                          # w.weight
            unif((1, f_out), b_lin),                             # w.bias
            jnp.ones((1, f_out), jnp.float32),                   # bn2 gamma
            jnp.zeros((1, f_out), jnp.float32),                  # bn2 beta
        ]
    enc_in = F_GCN[-1] + STATE_DIM
    be = 1.0 / LE_HS ** 0.5
    params += [unif((4 * LE_HS, enc_in), be), unif((4 * LE_HS, LE_HS), be),
               unif((1, 4 * LE_HS), be), unif((1, 4 * LE_HS), be)]
    bd = 1.0 / LD_HS ** 0.5
    params += [unif((4 * LD_HS, LE_HS), bd), unif((4 * LD_HS, LD_HS), bd),
               unif((1, 4 * LD_HS), bd), unif((1, 4 * LD_HS), bd)]
    for li in range(N_MLP):
        fi, fo = N_UNITS[li], N_UNITS[li + 1]
        bm = 1.0 / fi ** 0.5
        params += [unif((fo, fi), bm), unif((1, fo), bm)]
    return params


# ---------------------------------------------------------------------------
# Forward wrapper
# ---------------------------------------------------------------------------

@jax.jit
def scalenet_forward(x, state, le_h0, le_c0, ld_h0, ld_c0, mat_buf, vec_buf):
    in_buf = _pack_inputs(x, state, le_h0, le_c0, ld_h0, ld_c0)
    return pl.pallas_call(
        scalenet_kernel,
        out_shape=jax.ShapeDtypeStruct((BS, N_UNITS[-1]), jnp.float32),
        in_specs=[pl.BlockSpec(memory_space=pltpu.MemorySpace.VMEM)] * 3,
        out_specs=pl.BlockSpec(memory_space=pltpu.MemorySpace.VMEM),
        cost_estimate=pl.CostEstimate(flops=120_000, transcendentals=1_500,
                                      bytes_accessed=260_000),
    )(in_buf, mat_buf, vec_buf)


if __name__ == "__main__":
    key = jax.random.PRNGKey(0)
    k_x, k_s, k_h1, k_c1, k_h2, k_c2, k_p = jax.random.split(key, 7)
    x = jax.random.normal(k_x, (BS, F_GCN[0]), jnp.float32)
    state = jax.random.normal(k_s, (BS, STATE_DIM), jnp.float32)
    # TODO(synk): init_hidden_lstm uses unseeded torch.randn; replaced by
    # deterministic jax.random.normal stand-ins generated outside the kernel.
    le_h0 = jax.random.normal(k_h1, (BS, LE_HS), jnp.float32)
    le_c0 = jax.random.normal(k_c1, (BS, LE_HS), jnp.float32)
    ld_h0 = jax.random.normal(k_h2, (BS, LD_HS), jnp.float32)
    ld_c0 = jax.random.normal(k_c2, (BS, LD_HS), jnp.float32)
    params = init_params(k_p)
    mat_buf, vec_buf = pack_params(params)   # host-side, once

    out = scalenet_forward(x, state, le_h0, le_c0, ld_h0, ld_c0, mat_buf, vec_buf)
    jax.block_until_ready(out)
    assert out.shape == (BS, N_UNITS[-1]) and out.dtype == jnp.float32
    assert bool(jnp.all(jnp.isfinite(out)))
    print("KERNEL_OK")
</pallas_src>

<mosaic_0001>
module attributes {stable_mosaic.version = 11 : i64} {
  func.func @scalenet_kernel(%arg0: memref<9x80xf32, #tpu.memory_space<vmem>>, %arg1: memref<360x144xf32, #tpu.memory_space<vmem>>, %arg2: memref<80x144xf32, #tpu.memory_space<vmem>>, %arg3: memref<8x8xf32, #tpu.memory_space<vmem>>) attributes {dimension_semantics = [], scalar_prefetch = 0 : i64, scratch_operands = 0 : i64, tpu.core_type = #tpu.core_type<tc>} {
    %c0 = arith.constant 0 : index
    %c0_0 = arith.constant 0 : index
    %0 = vector.load %arg0[%c0, %c0_0] : memref<9x80xf32, #tpu.memory_space<vmem>>, vector<8x5xf32>
    %c0_1 = arith.constant 0 : index
    %c0_2 = arith.constant 0 : index
    %1 = vector.load %arg0[%c0_1, %c0_2] : memref<9x80xf32, #tpu.memory_space<vmem>>, vector<8x4xf32>
    %c0_3 = arith.constant 0 : index
    %c8 = arith.constant 8 : index
    %2 = vector.load %arg0[%c0_3, %c8] : memref<9x80xf32, #tpu.memory_space<vmem>>, vector<8x20xf32>
    %c0_4 = arith.constant 0 : index
    %c32 = arith.constant 32 : index
    %3 = vector.load %arg0[%c0_4, %c32] : memref<9x80xf32, #tpu.memory_space<vmem>>, vector<8x16xf32>
    %c0_5 = arith.constant 0 : index
    %c48 = arith.constant 48 : index
    %4 = vector.load %arg0[%c0_5, %c48] : memref<9x80xf32, #tpu.memory_space<vmem>>, vector<8x16xf32>
    %c0_6 = arith.constant 0 : index
    %c64 = arith.constant 64 : index
    %5 = vector.load %arg0[%c0_6, %c64] : memref<9x80xf32, #tpu.memory_space<vmem>>, vector<8x16xf32>
    %c8_7 = arith.constant 8 : index
    %c0_8 = arith.constant 0 : index
    %6 = vector.load %arg0[%c8_7, %c0_8] : memref<9x80xf32, #tpu.memory_space<vmem>>, vector<1x32xf32>
    %c320 = arith.constant 320 : index
    %c0_9 = arith.constant 0 : index
    %7 = vector.load %arg1[%c320, %c0_9] : memref<360x144xf32, #tpu.memory_space<vmem>>, vector<32x4xf32>
    %c352 = arith.constant 352 : index
    %c0_10 = arith.constant 0 : index
    %8 = vector.load %arg1[%c352, %c0_10] : memref<360x144xf32, #tpu.memory_space<vmem>>, vector<8x32xf32>
    %cst = arith.constant 5.000000e-01 : f32
    %9 = vector.broadcast %cst : f32 to vector<8x32xf32>
    %10 = arith.cmpf ogt, %8, %9 : vector<8x32xf32>
    %c120 = arith.constant 120 : index
    %c0_11 = arith.constant 0 : index
    %11 = vector.load %arg1[%c120, %c0_11] : memref<360x144xf32, #tpu.memory_space<vmem>>, vector<64x20xf32>
    %cst_12 = arith.constant dense<0.000000e+00> : vector<8x64xf32>
    %12 = tpu.matmul %2, %11, %cst_12 {dimension_numbers = #tpu.dot_dimension_numbers<[1], [1], [0], [0], [0, 0, 1, 0], [], []>} : vector<8x20xf32>, vector<64x20xf32>, vector<8x64xf32> -> vector<8x64xf32>
    %c56 = arith.constant 56 : index
    %c0_13 = arith.constant 0 : index
    %13 = vector.load %arg2[%c56, %c0_13] : memref<80x144xf32, #tpu.memory_space<vmem>>, vector<1x64xf32>
    %14 = vector.broadcast %13 : vector<1x64xf32> to vector<8x64xf32>
    %15 = arith.addf %12, %14 : vector<8x64xf32>
    %c248 = arith.constant 248 : index
    %c0_14 = arith.constant 0 : index
    %16 = vector.load %arg1[%c248, %c0_14] : memref<360x144xf32, #tpu.memory_space<vmem>>, vector<64x16xf32>
    %cst_15 = arith.constant dense<0.000000e+00> : vector<8x64xf32>
    %17 = tpu.matmul %4, %16, %cst_15 {dimension_numbers = #tpu.dot_dimension_numbers<[1], [1], [0], [0], [0, 0, 1, 0], [], []>} : vector<8x16xf32>, vector<64x16xf32>, vector<8x64xf32> -> vector<8x64xf32>
    %c64_16 = arith.constant 64 : index
    %c0_17 = arith.constant 0 : index
    %18 = vector.load %arg2[%c64_16, %c0_17] : memref<80x144xf32, #tpu.memory_space<vmem>>, vector<1x64xf32>
    %19 = vector.broadcast %18 : vector<1x64xf32> to vector<8x64xf32>
    %20 = arith.addf %17, %19 : vector<8x64xf32>
    %cst_18 = arith.constant dense<0.000000e+00> : vector<8x32xf32>
    %21 = tpu.matmul %1, %7, %cst_18 {dimension_numbers = #tpu.dot_dimension_numbers<[1], [1], [0], [0], [0, 0, 1, 0], [], []>} : vector<8x4xf32>, vector<32x4xf32>, vector<8x32xf32> -> vector<8x32xf32>
    %22 = vector.broadcast %6 : vector<1x32xf32> to vector<8x32xf32>
    %23 = arith.subf %21, %22 : vector<8x32xf32>
    %24 = math.absf %23 : vector<8x32xf32>
    %cst_19 = arith.constant dense<0.000000e+00> : vector<8x4xf32>
    %25 = tpu.matmul %24, %7, %cst_19 {dimension_numbers = #tpu.dot_dimension_numbers<[1], [0], [0], [1], [0, 0, 1, 1], [], []>} : vector<8x32xf32>, vector<32x4xf32>, vector<8x4xf32> -> vector<8x4xf32>
    %cst_20 = arith.constant 9.99999997E-7 : f32
    %26 = vector.broadcast %cst_20 : f32 to vector<8x4xf32>
    %27 = arith.cmpf ogt, %25, %26 : vector<8x4xf32>
    %cst_21 = arith.constant 1.000000e+00 : f32
    %28 = vector.broadcast %cst_21 : f32 to vector<8x4xf32>
    %29 = arith.select %27, %25, %28 : vector<8x4xi1>, vector<8x4xf32>
    %cst_22 = arith.constant dense<0.000000e+00> : vector<8x32xf32>
    %30 = tpu.matmul %29, %7, %cst_22 {dimension_numbers = #tpu.dot_dimension_numbers<[1], [1], [0], [0], [0, 0, 1, 0], [], []>} : vector<8x4xf32>, vector<32x4xf32>, vector<8x32xf32> -> vector<8x32xf32>
    %31 = arith.select %10, %30, %24 : vector<8x32xi1>, vector<8x32xf32>
    %cst_23 = arith.constant dense<0.000000e+00> : vector<32xf32>
    %32 = vector.multi_reduction <add>, %31, %cst_23 [0] : vector<8x32xf32> to vector<32xf32>
    %33 = vector.shape_cast %32 : vector<32xf32> to vector<1x32xf32>
    %cst_24 = arith.constant dense<0.000000e+00> : vector<1x4xf32>
    %34 = tpu.matmul %33, %7, %cst_24 {dimension_numbers = #tpu.dot_dimension_numbers<[1], [0], [0], [1], [0, 0, 1, 1], [], []>} : vector<1x32xf32>, vector<32x4xf32>, vector<1x4xf32> -> vector<1x4xf32>
    %cst_25 = arith.constant 1.562500e-02 : f32
    %35 = vector.broadcast %cst_25 : f32 to vector<1x4xf32>
    %36 = arith.mulf %34, %35 : vector<1x4xf32>
    %cst_26 = arith.constant dense<0.000000e+00> : vector<1x32xf32>
    %37 = tpu.matmul %36, %7, %cst_26 {dimension_numbers = #tpu.dot_dimension_numbers<[1], [1], [0], [0], [0, 0, 1, 0], [], []>} : vector<1x4xf32>, vector<32x4xf32>, vector<1x32xf32> -> vector<1x32xf32>
    %38 = vector.broadcast %37 : vector<1x32xf32> to vector<8x32xf32>
    %39 = arith.subf %31, %38 : vector<8x32xf32>
    %40 = arith.mulf %39, %39 : vector<8x32xf32>
    %cst_27 = arith.constant dense<0.000000e+00> : vector<32xf32>
    %41 = vector.multi_reduction <add>, %40, %cst_27 [0] : vector<8x32xf32> to vector<32xf32>
    %42 = vector.shape_cast %41 : vector<32xf32> to vector<1x32xf32>
    %cst_28 = arith.constant dense<0.000000e+00> : vector<1x4xf32>
    %43 = tpu.matmul %42, %7, %cst_28 {dimension_numbers = #tpu.dot_dimension_numbers<[1], [0], [0], [1], [0, 0, 1, 1], [], []>} : vector<1x32xf32>, vector<32x4xf32>, vector<1x4xf32> -> vector<1x4xf32>
    %cst_29 = arith.constant 1.562500e-02 : f32
    %44 = vector.broadcast %cst_29 : f32 to vector<1x4xf32>
    %45 = arith.mulf %43, %44 : vector<1x4xf32>
    %cst_30 = arith.constant 9.99999974E-6 : f32
    %46 = vector.broadcast %cst_30 : f32 to vector<1x4xf32>
    %47 = arith.addf %45, %46 : vector<1x4xf32>
    %48 = math.rsqrt %47 : vector<1x4xf32>
    %cst_31 = arith.constant dense<0.000000e+00> : vector<1x32xf32>
    %49 = tpu.matmul %48, %7, %cst_31 {dimension_numbers = #tpu.dot_dimension_numbers<[1], [1], [0], [0], [0, 0, 1, 0], [], []>} : vector<1x4xf32>, vector<32x4xf32>, vector<1x32xf32> -> vector<1x32xf32>
    %50 = vector.broadcast %49 : vector<1x32xf32> to vector<8x32xf32>
    %51 = arith.mulf %39, %50 : vector<8x32xf32>
    %c0_32 = arith.constant 0 : index
    %c0_33 = arith.constant 0 : index
    %52 = vector.load %arg1[%c0_32, %c0_33] : memref<360x144xf32, #tpu.memory_space<vmem>>, vector<32x144xf32>
    %cst_34 = arith.constant dense<0.000000e+00> : vector<8x144xf32>
    %53 = tpu.matmul %51, %52, %cst_34 {dimension_numbers = #tpu.dot_dimension_numbers<[1], [0], [0], [1], [0, 0, 1, 1], [], []>} : vector<8x32xf32>, vector<32x144xf32>, vector<8x144xf32> -> vector<8x144xf32>
    %c0_35 = arith.constant 0 : index
    %c0_36 = arith.constant 0 : index
    %54 = vector.load %arg2[%c0_35, %c0_36] : memref<80x144xf32, #tpu.memory_space<vmem>>, vector<1x144xf32>
    %55 = vector.broadcast %54 : vector<1x144xf32> to vector<8x144xf32>
    %56 = arith.addf %53, %55 : vector<8x144xf32>
    %57 = vector.extract_strided_slice %56 {offsets = [0, 0], sizes = [8, 64], strides = [1, 1]} : vector<8x144xf32> to vector<8x64xf32>
    %cst_37 = arith.constant dense<0.000000e+00> : vector<8x8xf32>
    %58 = tpu.matmul %57, %57, %cst_37 {dimension_numbers = #tpu.dot_dimension_numbers<[1], [1], [0], [0], [0, 0, 1, 0], [], []>} : vector<8x64xf32>, vector<8x64xf32>, vector<8x8xf32> -> vector<8x8xf32>
    %cst_38 = arith.constant dense<0xFF800000> : vector<8xf32>
    %59 = vector.multi_reduction <maximumf>, %58, %cst_38 [1] : vector<8x8xf32> to vector<8xf32>
    %60 = vector.shape_cast %59 : vector<8xf32> to vector<8x1xf32>
    %61 = vector.broadcast %60 : vector<8x1xf32> to vector<8x8xf32>
    %62 = arith.subf %58, %61 : vector<8x8xf32>
    %63 = math.exp %62 : vector<8x8xf32>
    %cst_39 = arith.constant dense<0.000000e+00> : vector<8xf32>
    %64 = vector.multi_reduction <add>, %63, %cst_39 [1] : vector<8x8xf32> to vector<8xf32>
    %65 = vector.shape_cast %64 : vector<8xf32> to vector<8x1xf32>
    %66 = tpu.reciprocal %65 {approx = true} : vector<8x1xf32> -> vector<8x1xf32>
    %67 = vector.broadcast %66 : vector<8x1xf32> to vector<8x8xf32>
    %68 = arith.mulf %63, %67 : vector<8x8xf32>
    %69 = vector.extract_strided_slice %56 {offsets = [0, 128], sizes = [8, 8], strides = [1, 1]} : vector<8x144xf32> to vector<8x8xf32>
    %70 = arith.mulf %68, %69 : vector<8x8xf32>
    %71 = vector.extract_strided_slice %56 {offsets = [0, 64], sizes = [8, 64], strides = [1, 1]} : vector<8x144xf32> to vector<8x64xf32>
    %cst_40 = arith.constant dense<0.000000e+00> : vector<8x8xf32>
    %72 = tpu.matmul %71, %71, %cst_40 {dimension_numbers = #tpu.dot_dimension_numbers<[1], [1], [0], [0], [0, 0, 1, 0], [], []>} : vector<8x64xf32>, vector<8x64xf32>, vector<8x8xf32> -> vector<8x8xf32>
    %cst_41 = arith.constant dense<0xFF800000> : vector<8xf32>
    %73 = vector.multi_reduction <maximumf>, %72, %cst_41 [1] : vector<8x8xf32> to vector<8xf32>
    %74 = vector.shape_cast %73 : vector<8xf32> to vector<8x1xf32>
    %75 = vector.broadcast %74 : vector<8x1xf32> to vector<8x8xf32>
    %76 = arith.subf %72, %75 : vector<8x8xf32>
    %77 = math.exp %76 : vector<8x8xf32>
    %cst_42 = arith.constant dense<0.000000e+00> : vector<8xf32>
    %78 = vector.multi_reduction <add>, %77, %cst_42 [1] : vector<8x8xf32> to vector<8xf32>
    %79 = vector.shape_cast %78 : vector<8xf32> to vector<8x1xf32>
    %80 = tpu.reciprocal %79 {approx = true} : vector<8x1xf32> -> vector<8x1xf32>
    %81 = vector.broadcast %80 : vector<8x1xf32> to vector<8x8xf32>
    %82 = arith.mulf %77, %81 : vector<8x8xf32>
    %83 = vector.extract_strided_slice %56 {offsets = [0, 136], sizes = [8, 8], strides = [1, 1]} : vector<8x144xf32> to vector<8x8xf32>
    %84 = arith.mulf %82, %83 : vector<8x8xf32>
    %cst_43 = arith.constant dense<0.000000e+00> : vector<8x5xf32>
    %85 = tpu.matmul %70, %0, %cst_43 {dimension_numbers = #tpu.dot_dimension_numbers<[1], [0], [0], [1], [0, 0, 1, 1], [], []>} : vector<8x8xf32>, vector<8x5xf32>, vector<8x5xf32> -> vector<8x5xf32>
    %c32_44 = arith.constant 32 : index
    %c0_45 = arith.constant 0 : index
    %86 = vector.load %arg1[%c32_44, %c0_45] : memref<360x144xf32, #tpu.memory_space<vmem>>, vector<16x5xf32>
    %cst_46 = arith.constant dense<0.000000e+00> : vector<8x16xf32>
    %87 = tpu.matmul %85, %86, %cst_46 {dimension_numbers = #tpu.dot_dimension_numbers<[1], [1], [0], [0], [0, 0, 1, 0], [], []>} : vector<8x5xf32>, vector<16x5xf32>, vector<8x16xf32> -> vector<8x16xf32>
    %c8_47 = arith.constant 8 : index
    %c0_48 = arith.constant 0 : index
    %88 = vector.load %arg2[%c8_47, %c0_48] : memref<80x144xf32, #tpu.memory_space<vmem>>, vector<1x16xf32>
    %89 = vector.broadcast %88 : vector<1x16xf32> to vector<8x16xf32>
    %90 = arith.addf %87, %89 : vector<8x16xf32>
    %cst_49 = arith.constant dense<0.000000e+00> : vector<16xf32>
    %91 = vector.multi_reduction <add>, %90, %cst_49 [0] : vector<8x16xf32> to vector<16xf32>
    %92 = vector.shape_cast %91 : vector<16xf32> to vector<1x16xf32>
    %cst_50 = arith.constant 8.000000e+00 : f32
    %93 = vector.broadcast %cst_50 : f32 to vector<1x16xf32>
    %94 = arith.divf %92, %93 : vector<1x16xf32>
    %95 = vector.broadcast %94 : vector<1x16xf32> to vector<8x16xf32>
    %96 = arith.subf %90, %95 : vector<8x16xf32>
    %97 = arith.mulf %96, %96 : vector<8x16xf32>
    %cst_51 = arith.constant dense<0.000000e+00> : vector<16xf32>
    %98 = vector.multi_reduction <add>, %97, %cst_51 [0] : vector<8x16xf32> to vector<16xf32>
    %99 = vector.shape_cast %98 : vector<16xf32> to vector<1x16xf32>
    %cst_52 = arith.constant 8.000000e+00 : f32
    %100 = vector.broadcast %cst_52 : f32 to vector<1x16xf32>
    %101 = arith.divf %99, %100 : vector<1x16xf32>
    %102 = vector.broadcast %94 : vector<1x16xf32> to vector<8x16xf32>
    %103 = arith.subf %90, %102 : vector<8x16xf32>
    %cst_53 = arith.constant 9.99999974E-6 : f32
    %104 = vector.broadcast %cst_53 : f32 to vector<1x16xf32>
    %105 = arith.addf %101, %104 : vector<1x16xf32>
    %106 = math.rsqrt %105 : vector<1x16xf32>
    %107 = vector.broadcast %106 : vector<1x16xf32> to vector<8x16xf32>
    %108 = arith.mulf %103, %107 : vector<8x16xf32>
    %c16 = arith.constant 16 : index
    %c0_54 = arith.constant 0 : index
    %109 = vector.load %arg2[%c16, %c0_54] : memref<80x144xf32, #tpu.memory_space<vmem>>, vector<1x16xf32>
    %110 = vector.broadcast %109 : vector<1x16xf32> to vector<8x16xf32>
    %111 = arith.mulf %108, %110 : vector<8x16xf32>
    %c24 = arith.constant 24 : index
    %c0_55 = arith.constant 0 : index
    %112 = vector.load %arg2[%c24, %c0_55] : memref<80x144xf32, #tpu.memory_space<vmem>>, vector<1x16xf32>
    %113 = vector.broadcast %112 : vector<1x16xf32> to vector<8x16xf32>
    %114 = arith.addf %111, %113 : vector<8x16xf32>
    %115 = math.tanh %114 : vector<8x16xf32>
    %cst_56 = arith.constant dense<0.000000e+00> : vector<8x16xf32>
    %116 = tpu.matmul %84, %115, %cst_56 {dimension_numbers = #tpu.dot_dimension_numbers<[1], [0], [0], [1], [0, 0, 1, 1], [], []>} : vector<8x8xf32>, vector<8x16xf32>, vector<8x16xf32> -> vector<8x16xf32>
    %c48_57 = arith.constant 48 : index
    %c0_58 = arith.constant 0 : index
    %117 = vector.load %arg1[%c48_57, %c0_58] : memref<360x144xf32, #tpu.memory_space<vmem>>, vector<8x16xf32>
    %cst_59 = arith.constant dense<0.000000e+00> : vector<8x8xf32>
    %118 = tpu.matmul %116, %117, %cst_59 {dimension_numbers = #tpu.dot_dimension_numbers<[1], [1], [0], [0], [0, 0, 1, 0], [], []>} : vector<8x16xf32>, vector<8x16xf32>, vector<8x8xf32> -> vector<8x8xf32>
    %c32_60 = arith.constant 32 : index
    %c0_61 = arith.constant 0 : index
    %119 = vector.load %arg2[%c32_60, %c0_61] : memref<80x144xf32, #tpu.memory_space<vmem>>, vector<1x8xf32>
    %120 = vector.broadcast %119 : vector<1x8xf32> to vector<8x8xf32>
    %121 = arith.addf %118, %120 : vector<8x8xf32>
    %cst_62 = arith.constant dense<0.000000e+00> : vector<8xf32>
    %122 = vector.multi_reduction <add>, %121, %cst_62 [0] : vector<8x8xf32> to vector<8xf32>
    %123 = vector.shape_cast %122 : vector<8xf32> to vector<1x8xf32>
    %cst_63 = arith.constant 8.000000e+00 : f32
    %124 = vector.broadcast %cst_63 : f32 to vector<1x8xf32>
    %125 = arith.divf %123, %124 : vector<1x8xf32>
    %126 = vector.broadcast %125 : vector<1x8xf32> to vector<8x8xf32>
    %127 = arith.subf %121, %126 : vector<8x8xf32>
    %128 = arith.mulf %127, %127 : vector<8x8xf32>
    %cst_64 = arith.constant dense<0.000000e+00> : vector<8xf32>
    %129 = vector.multi_reduction <add>, %128, %cst_64 [0] : vector<8x8xf32> to vector<8xf32>
    %130 = vector.shape_cast %129 : vector<8xf32> to vector<1x8xf32>
    %cst_65 = arith.constant 8.000000e+00 : f32
    %131 = vector.broadcast %cst_65 : f32 to vector<1x8xf32>
    %132 = arith.divf %130, %131 : vector<1x8xf32>
    %133 = vector.broadcast %125 : vector<1x8xf32> to vector<8x8xf32>
    %134 = arith.subf %121, %133 : vector<8x8xf32>
    %cst_66 = arith.constant 9.99999974E-6 : f32
    %135 = vector.broadcast %cst_66 : f32 to vector<1x8xf32>
    %136 = arith.addf %132, %135 : vector<1x8xf32>
    %137 = math.rsqrt %136 : vector<1x8xf32>
    %138 = vector.broadcast %137 : vector<1x8xf32> to vector<8x8xf32>
    %139 = arith.mulf %134, %138 : vector<8x8xf32>
    %c40 = arith.constant 40 : index
    %c0_67 = arith.constant 0 : index
    %140 = vector.load %arg2[%c40, %c0_67] : memref<80x144xf32, #tpu.memory_space<vmem>>, vector<1x8xf32>
    %141 = vector.broadcast %140 : vector<1x8xf32> to vector<8x8xf32>
    %142 = arith.mulf %139, %141 : vector<8x8xf32>
    %c48_68 = arith.constant 48 : index
    %c0_69 = arith.constant 0 : index
    %143 = vector.load %arg2[%c48_68, %c0_69] : memref<80x144xf32, #tpu.memory_space<vmem>>, vector<1x8xf32>
    %144 = vector.broadcast %143 : vector<1x8xf32> to vector<8x8xf32>
    %145 = arith.addf %142, %144 : vector<8x8xf32>
    %146 = math.tanh %145 : vector<8x8xf32>
    %c56_70 = arith.constant 56 : index
    %c0_71 = arith.constant 0 : index
    %147 = vector.load %arg1[%c56_70, %c0_71] : memref<360x144xf32, #tpu.memory_space<vmem>>, vector<64x8xf32>
    %cst_72 = arith.constant dense<0.000000e+00> : vector<8x64xf32>
    %148 = tpu.matmul %146, %147, %cst_72 {dimension_numbers = #tpu.dot_dimension_numbers<[1], [1], [0], [0], [0, 0, 1, 0], [], []>} : vector<8x8xf32>, vector<64x8xf32>, vector<8x64xf32> -> vector<8x64xf32>
    %149 = arith.addf %148, %15 : vector<8x64xf32>
    %150 = vector.extract_strided_slice %149 {offsets = [0, 0], sizes = [8, 16], strides = [1, 1]} : vector<8x64xf32> to vector<8x16xf32>
    %cst_73 = arith.constant 5.000000e-01 : f32
    %151 = vector.broadcast %cst_73 : f32 to vector<8x16xf32>
    %152 = arith.mulf %151, %150 : vector<8x16xf32>
    %153 = math.tanh %152 : vector<8x16xf32>
    %cst_74 = arith.constant 1.000000e+00 : f32
    %154 = vector.broadcast %cst_74 : f32 to vector<8x16xf32>
    %155 = arith.addf %153, %154 : vector<8x16xf32>
    %cst_75 = arith.constant 5.000000e-01 : f32
    %156 = vector.broadcast %cst_75 : f32 to vector<8x16xf32>
    %157 = arith.mulf %156, %155 : vector<8x16xf32>
    %158 = vector.extract_strided_slice %149 {offsets = [0, 16], sizes = [8, 16], strides = [1, 1]} : vector<8x64xf32> to vector<8x16xf32>
    %cst_76 = arith.constant 5.000000e-01 : f32
    %159 = vector.broadcast %cst_76 : f32 to vector<8x16xf32>
    %160 = arith.mulf %159, %158 : vector<8x16xf32>
    %161 = math.tanh %160 : vector<8x16xf32>
    %cst_77 = arith.constant 1.000000e+00 : f32
    %162 = vector.broadcast %cst_77 : f32 to vector<8x16xf32>
    %163 = arith.addf %161, %162 : vector<8x16xf32>
    %cst_78 = arith.constant 5.000000e-01 : f32
    %164 = vector.broadcast %cst_78 : f32 to vector<8x16xf32>
    %165 = arith.mulf %164, %163 : vector<8x16xf32>
    %166 = vector.extract_strided_slice %149 {offsets = [0, 32], sizes = [8, 16], strides = [1, 1]} : vector<8x64xf32> to vector<8x16xf32>
    %167 = math.tanh %166 : vector<8x16xf32>
    %168 = vector.extract_strided_slice %149 {offsets = [0, 48], sizes = [8, 16], strides = [1, 1]} : vector<8x64xf32> to vector<8x16xf32>
    %cst_79 = arith.constant 5.000000e-01 : f32
    %169 = vector.broadcast %cst_79 : f32 to vector<8x16xf32>
    %170 = arith.mulf %169, %168 : vector<8x16xf32>
    %171 = math.tanh %170 : vector<8x16xf32>
    %cst_80 = arith.constant 1.000000e+00 : f32
    %172 = vector.broadcast %cst_80 : f32 to vector<8x16xf32>
    %173 = arith.addf %171, %172 : vector<8x16xf32>
    %cst_81 = arith.constant 5.000000e-01 : f32
    %174 = vector.broadcast %cst_81 : f32 to vector<8x16xf32>
    %175 = arith.mulf %174, %173 : vector<8x16xf32>
    %176 = arith.mulf %165, %3 : vector<8x16xf32>
    %177 = arith.mulf %157, %167 : vector<8x16xf32>
    %178 = arith.addf %176, %177 : vector<8x16xf32>
    %179 = math.tanh %178 : vector<8x16xf32>
    %180 = arith.mulf %175, %179 : vector<8x16xf32>
    %c184 = arith.constant 184 : index
    %c0_82 = arith.constant 0 : index
    %181 = vector.load %arg1[%c184, %c0_82] : memref<360x144xf32, #tpu.memory_space<vmem>>, vector<64x16xf32>
    %cst_83 = arith.constant dense<0.000000e+00> : vector<8x64xf32>
    %182 = tpu.matmul %180, %181, %cst_83 {dimension_numbers = #tpu.dot_dimension_numbers<[1], [1], [0], [0], [0, 0, 1, 0], [], []>} : vector<8x16xf32>, vector<64x16xf32>, vector<8x64xf32> -> vector<8x64xf32>
    %183 = arith.addf %182, %20 : vector<8x64xf32>
    %184 = vector.extract_strided_slice %183 {offsets = [0, 0], sizes = [8, 16], strides = [1, 1]} : vector<8x64xf32> to vector<8x16xf32>
    %cst_84 = arith.constant 5.000000e-01 : f32
    %185 = vector.broadcast %cst_84 : f32 to vector<8x16xf32>
    %186 = arith.mulf %185, %184 : vector<8x16xf32>
    %187 = math.tanh %186 : vector<8x16xf32>
    %cst_85 = arith.constant 1.000000e+00 : f32
    %188 = vector.broadcast %cst_85 : f32 to vector<8x16xf32>
    %189 = arith.addf %187, %188 : vector<8x16xf32>
    %cst_86 = arith.constant 5.000000e-01 : f32
    %190 = vector.broadcast %cst_86 : f32 to vector<8x16xf32>
    %191 = arith.mulf %190, %189 : vector<8x16xf32>
    %192 = vector.extract_strided_slice %183 {offsets = [0, 16], sizes = [8, 16], strides = [1, 1]} : vector<8x64xf32> to vector<8x16xf32>
    %cst_87 = arith.constant 5.000000e-01 : f32
    %193 = vector.broadcast %cst_87 : f32 to vector<8x16xf32>
    %194 = arith.mulf %193, %192 : vector<8x16xf32>
    %195 = math.tanh %194 : vector<8x16xf32>
    %cst_88 = arith.constant 1.000000e+00 : f32
    %196 = vector.broadcast %cst_88 : f32 to vector<8x16xf32>
    %197 = arith.addf %195, %196 : vector<8x16xf32>
    %cst_89 = arith.constant 5.000000e-01 : f32
    %198 = vector.broadcast %cst_89 : f32 to vector<8x16xf32>
    %199 = arith.mulf %198, %197 : vector<8x16xf32>
    %200 = vector.extract_strided_slice %183 {offsets = [0, 32], sizes = [8, 16], strides = [1, 1]} : vector<8x64xf32> to vector<8x16xf32>
    %201 = math.tanh %200 : vector<8x16xf32>
    %202 = vector.extract_strided_slice %183 {offsets = [0, 48], sizes = [8, 16], strides = [1, 1]} : vector<8x64xf32> to vector<8x16xf32>
    %cst_90 = arith.constant 5.000000e-01 : f32
    %203 = vector.broadcast %cst_90 : f32 to vector<8x16xf32>
    %204 = arith.mulf %203, %202 : vector<8x16xf32>
    %205 = math.tanh %204 : vector<8x16xf32>
    %cst_91 = arith.constant 1.000000e+00 : f32
    %206 = vector.broadcast %cst_91 : f32 to vector<8x16xf32>
    %207 = arith.addf %205, %206 : vector<8x16xf32>
    %cst_92 = arith.constant 5.000000e-01 : f32
    %208 = vector.broadcast %cst_92 : f32 to vector<8x16xf32>
    %209 = arith.mulf %208, %207 : vector<8x16xf32>
    %210 = arith.mulf %199, %5 : vector<8x16xf32>
    %211 = arith.mulf %191, %201 : vector<8x16xf32>
    %212 = arith.addf %210, %211 : vector<8x16xf32>
    %213 = math.tanh %212 : vector<8x16xf32>
    %214 = arith.mulf %209, %213 : vector<8x16xf32>
    %cst_93 = arith.constant 0.000000e+00 : f32
    %215 = vector.broadcast %cst_93 : f32 to vector<8x16xf32>
    %216 = arith.maximumf %214, %215 : vector<8x16xf32>
    %c312 = arith.constant 312 : index
    %c0_94 = arith.constant 0 : index
    %217 = vector.load %arg1[%c312, %c0_94] : memref<360x144xf32, #tpu.memory_space<vmem>>, vector<8x16xf32>
    %cst_95 = arith.constant dense<0.000000e+00> : vector<8x8xf32>
    %218 = tpu.matmul %216, %217, %cst_95 {dimension_numbers = #tpu.dot_dimension_numbers<[1], [1], [0], [0], [0, 0, 1, 0], [], []>} : vector<8x16xf32>, vector<8x16xf32>, vector<8x8xf32> -> vector<8x8xf32>
    %c72 = arith.constant 72 : index
    %c0_96 = arith.constant 0 : index
    %219 = vector.load %arg2[%c72, %c0_96] : memref<80x144xf32, #tpu.memory_space<vmem>>, vector<1x8xf32>
    %220 = vector.broadcast %219 : vector<1x8xf32> to vector<8x8xf32>
    %221 = arith.addf %218, %220 : vector<8x8xf32>
    %cst_97 = arith.constant 0.000000e+00 : f32
    %222 = vector.broadcast %cst_97 : f32 to vector<8x8xf32>
    %223 = arith.maximumf %221, %222 : vector<8x8xf32>
    %c0_98 = arith.constant 0 : index
    %c0_99 = arith.constant 0 : index
    %224 = vector.load %arg3[%c0_98, %c0_99] : memref<8x8xf32, #tpu.memory_space<vmem>>, vector<8x8xf32>
    tpu.vector_store %arg3[%c0_98, %c0_99], %223 {strides = array<i32>} : memref<8x8xf32, #tpu.memory_space<vmem>>, vector<8x8xf32>,
    return
  }
}

</mosaic_0001>

<llo_original>
// kernel: scalenet_forward.1
$region0: #{scalenet_forward.1}
  #allocation0 [shape = 'u32[]', space=smem, size = 0x4, offset = 0x4, fixed_abs, tag = 'smem constant byte address 0x4 - core index']
  #allocation1 [shape = 'u32[144,128]{1,0:T(1,128)}', space=vmem, size = 0x12000, scoped, tag = 'internal scratch']
  %s0 = inlined_call_operand.vmem [shape: f32[9,80], index: 0, kind: input, shape index: {}]
  %s1 = inlined_call_operand.vmem [shape: f32[360,144], index: 1, kind: input, shape index: {}]
  %s2 = inlined_call_operand.vmem [shape: f32[80,144], index: 2, kind: input, shape index: {}]
  %s3 = inlined_call_operand.hbm [shape: f32[8,8], index: 3, kind: output, shape index: {}]
  %s4 = sld [smem:[#allocation0]]
  $region22: #{scalenet_forward.1} parent=0
    _
  %s6 = ssub.s32 1, %s4
  %s7 = scalar_select 0, %s6, %s4
  $region1: #{scalenet_forward.1} parent=0
    #allocation2 [shape = 'u8[4096]{0}', space=vmem, size = 0x1000, scoped, tag = 'output window, operand 0, single buffered']
    #allocation3 [shape = 's32[1]{0}', space=sflag, size = 0x4, scoped, tag = 'scoped memory for scalenet_forward.1']
    %8 = vsyncpa [#allocation3], 0
    // Predicated region
    $region2: #{scalenet_forward.1} parent=1 // pred_check
      _
    $region3: #{scalenet_forward.1} parent=1 // pred_check_branch
      %10 = sbr.rel (0) target = $region5
    $region4: #{scalenet_forward.1} parent=1 // pred_region
      _
    $region5: #{scalenet_forward.1} parent=1 // pred_fallthru
      _
    // Predicated region
    $region6: #{scalenet_forward.1} parent=1 // pred_check
      _
    $region7: #{scalenet_forward.1} parent=1 // pred_check_branch
      %12 = sbr.rel (0) target = $region9
    $region8: #{scalenet_forward.1} parent=1 // pred_region
      _
    $region9: #{scalenet_forward.1} parent=1 // pred_fallthru
      _
    // Predicated region
    $region10: #{scalenet_forward.1} parent=1 // pred_check
      _
    $region11: #{scalenet_forward.1} parent=1 // pred_check_branch
      %14 = sbr.rel (0) target = $region13
    $region12: #{scalenet_forward.1} parent=1 // pred_region
      _
    $region13: #{scalenet_forward.1} parent=1 // pred_fallthru
      _
    %v15 = vld [vmem:[%s0] sm:$0xff]
    %v16 = vld [vmem:[%s0 + $0x8] sm:$0x1]
    %v17 = vld [vmem:[%s1 + $0x280] sm:$0xff]
    %v18 = vld [vmem:[%s1 + $0x290] sm:$0xff]
    %v19 = vld [vmem:[%s1 + $0x2a0] sm:$0xff]
    %v20 = vld [vmem:[%s1 + $0x2b0] sm:$0xff]
    %v21 = vld [vmem:[%s1 + $0x2c0] sm:$0xff]
    %vm22 = vcmp.gt.f32.partialorder %v21, 0.5
    %v23 = vld [vmem:[%s1 + $0xf0] sm:$0xff]
    %v24 = vld [vmem:[%s1 + $0x100] sm:$0xff]
    %v25 = vld [vmem:[%s1 + $0x110] sm:$0xff]
    %v26 = vld [vmem:[%s1 + $0x120] sm:$0xff]
    %v27 = vld [vmem:[%s1 + $0x130] sm:$0xff]
    %v28 = vld [vmem:[%s1 + $0x140] sm:$0xff]
    %v29 = vld [vmem:[%s1 + $0x150] sm:$0xff]
    %v30 = vld [vmem:[%s1 + $0x160] sm:$0xff]
    %v31 = vld [vmem:[%s2 + $0x70] ss:$0 sm:$0xff]
    %33 = vrot.lane.b32.xlu0 %v15, 120
    %v34 = vpop.permute.xlu0 %33
    %vm35 = vcmask 162816
    %v36 = vsel %vm35, %v34, 0
    %v39 = vsel %vm35, %v23, 0
    %v42 = vsel %vm35, %v24, 0
    %v45 = vsel %vm35, %v25, 0
    %v48 = vsel %vm35, %v26, 0
    %v51 = vsel %vm35, %v27, 0
    %v54 = vsel %vm35, %v28, 0
    %v57 = vsel %vm35, %v29, 0
    %v60 = vsel %vm35, %v30, 0
    %62 = vmatprep.subr.mxu0 0.0
    %63 = vmatpush1.xpose.msra.mxu0 %v39
    %64 = vmatprep.subr.mxu0 0.0
    %65 = vmatpush1.xpose.msra.mxu0 %v42
    %66 = vmatprep.subr.mxu0 0.0
    %67 = vmatpush1.xpose.msra.mxu0 %v45
    %68 = vmatprep.subr.mxu0 0.0
    %69 = vmatpush1.xpose.msra.mxu0 %v48
    %70 = vmatprep.subr.mxu0 0.0
    %71 = vmatpush1.xpose.msra.mxu0 %v51
    %72 = vmatprep.subr.mxu0 0.0
    %73 = vmatpush1.xpose.msra.mxu0 %v54
    %74 = vmatprep.subr.mxu0 0.0
    %75 = vmatpush1.xpose.msra.mxu0 %v57
    %76 = vmatprep.subr.mxu0 0.0
    %77 = vmatpush1.xpose.msra.mxu0 %v60
    %78 = vmatprep.subr.mxu0 0.0
    %79 = vmatpush1.xpose.msra.mxu0 0.0
    %80 = vmatprep.subr.mxu0 0.0
    %81 = vmatpush1.xpose.msra.mxu0 0.0
    %82 = vmatprep.subr.mxu0 0.0
    %83 = vmatpush1.xpose.msra.mxu0 0.0
    %84 = vmatprep.subr.mxu0 0.0
    %85 = vmatpush1.xpose.msra.mxu0 0.0
    %86 = vmatprep.subr.mxu0 0.0
    %87 = vmatpush1.xpose.msra.mxu0 0.0
    %88 = vmatprep.subr.mxu0 0.0
    %89 = vmatpush1.xpose.msra.mxu0 0.0
    %90 = vmatprep.subr.mxu0 0.0
    %91 = vmatpush1.xpose.msra.mxu0 0.0
    %92 = vmatprep.subr.mxu0 0.0
    %93 = vmatpush1.xpose.msra.mxu0 0.0
    %94 = vmatprep.subr.mxu0 0.0
    %95 = vmatpush1.xpose.msra.mxu0 0.0
    %96 = vmatprep.subr.mxu0 0.0
    %97 = vmatpush1.xpose.msra.mxu0 0.0
    %98 = vmatprep.subr.mxu0 0.0
    %99 = vmatpush1.xpose.msra.mxu0 0.0
    %100 = vmatprep.subr.mxu0 0.0
    %101 = vmatpush1.xpose.msra.mxu0 0.0
    %102 = vmatprep.subr.mxu0 0.0
    %103 = vmatpush1.xpose.msra.mxu0 0.0
    %104 = vmatprep.subr.mxu0 0.0
    %105 = vmatpush1.xpose.msra.mxu0 0.0
    %106 = vmatprep.subr.mxu0 0.0
    %107 = vmatpush1.xpose.msra.mxu0 0.0
    %108 = vmatprep.subr.mxu0 0.0
    %109 = vmatpush1.xpose.msra.mxu0 0.0
    %110 = vmatprep.subr.mxu0 0.0
    %111 = vmatpush1.xpose.msra.mxu0 0.0
    %112 = vmatprep.subr.mxu0 0.0
    %113 = vmatpush1.xpose.msra.mxu0 0.0
    %114 = vmatprep.subr.mxu0 0.0
    %115 = vmatpush1.xpose.msra.mxu0 0.0
    %116 = vmatprep.subr.mxu0 0.0
    %117 = vmatpush1.xpose.msra.mxu0 0.0
    %118 = vmatprep.subr.mxu0 0.0
    %119 = vmatpush1.xpose.msra.mxu0 0.0
    %120 = vmatprep.subr.mxu0 0.0
    %121 = vmatpush1.xpose.msra.mxu0 0.0
    %122 = vmatprep.subr.mxu0 0.0
    %123 = vmatpush1.xpose.msra.mxu0 0.0
    %124 = vmatprep.subr.mxu0 0.0
    %125 = vmatpush1.xpose.msra.mxu0 0.0
    %126 = vmatprep.mubr.f32.mxu0 0.0
    %127 = vmatmul.mubr.f32.gmra.mrb[0].mxu0 %v36
    %v128 = vpop.f32.mrb[0].mxu0
    %v129 = vadd.f32 %v31, %v128
    %v130 = vpop.f32.mrb[0].mxu0
    %131 = vdwg.mxu0
    %v132 = vld [vmem:[%s1 + $0x1f0] sm:$0xff]
    %v133 = vld [vmem:[%s1 + $0x200] sm:$0xff]
    %v134 = vld [vmem:[%s1 + $0x210] sm:$0xff]
    %v135 = vld [vmem:[%s1 + $0x220] sm:$0xff]
    %v136 = vld [vmem:[%s1 + $0x230] sm:$0xff]
    %v137 = vld [vmem:[%s1 + $0x240] sm:$0xff]
    %v138 = vld [vmem:[%s1 + $0x250] sm:$0xff]
    %v139 = vld [vmem:[%s1 + $0x260] sm:$0xff]
    %v140 = vld [vmem:[%s2 + $0x80] ss:$0 sm:$0xff]
    %141 = vrot.lane.b32.xlu0 %v15, 80
    %v142 = vpop.permute.xlu0 %141
    %vm143 = vcmask 130048
    %v144 = vsel %vm143, %v142, 0
    %v147 = vsel %vm143, %v132, 0
    %v150 = vsel %vm143, %v133, 0
    %v153 = vsel %vm143, %v134, 0
    %v156 = vsel %vm143, %v135, 0
    %v159 = vsel %vm143, %v136, 0
    %v162 = vsel %vm143, %v137, 0
    %v165 = vsel %vm143, %v138, 0
    %v168 = vsel %vm143, %v139, 0
    %170 = vmatprep.subr.mxu0 0.0
    %171 = vmatpush1.xpose.msra.mxu0 %v147
    %172 = vmatprep.subr.mxu0 0.0
    %173 = vmatpush1.xpose.msra.mxu0 %v150
    %174 = vmatprep.subr.mxu0 0.0
    %175 = vmatpush1.xpose.msra.mxu0 %v153
    %176 = vmatprep.subr.mxu0 0.0
    %177 = vmatpush1.xpose.msra.mxu0 %v156
    %178 = vmatprep.subr.mxu0 0.0
    %179 = vmatpush1.xpose.msra.mxu0 %v159
    %180 = vmatprep.subr.mxu0 0.0
    %181 = vmatpush1.xpose.msra.mxu0 %v162
    %182 = vmatprep.subr.mxu0 0.0
    %183 = vmatpush1.xpose.msra.mxu0 %v165
    %184 = vmatprep.subr.mxu0 0.0
    %185 = vmatpush1.xpose.msra.mxu0 %v168
    %186 = vmatprep.subr.mxu0 0.0
    %187 = vmatpush1.xpose.msra.mxu0 0.0
    %188 = vmatprep.subr.mxu0 0.0
    %189 = vmatpush1.xpose.msra.mxu0 0.0
    %190 = vmatprep.subr.mxu0 0.0
    %191 = vmatpush1.xpose.msra.mxu0 0.0
    %192 = vmatprep.subr.mxu0 0.0
    %193 = vmatpush1.xpose.msra.mxu0 0.0
    %194 = vmatprep.subr.mxu0 0.0
    %195 = vmatpush1.xpose.msra.mxu0 0.0
    %196 = vmatprep.subr.mxu0 0.0
    %197 = vmatpush1.xpose.msra.mxu0 0.0
    %198 = vmatprep.subr.mxu0 0.0
    %199 = vmatpush1.xpose.msra.mxu0 0.0
    %200 = vmatprep.subr.mxu0 0.0
    %201 = vmatpush1.xpose.msra.mxu0 0.0
    %202 = vmatprep.subr.mxu0 0.0
    %203 = vmatpush1.xpose.msra.mxu0 0.0
    %204 = vmatprep.subr.mxu0 0.0
    %205 = vmatpush1.xpose.msra.mxu0 0.0
    %206 = vmatprep.subr.mxu0 0.0
    %207 = vmatpush1.xpose.msra.mxu0 0.0
    %208 = vmatprep.subr.mxu0 0.0
    %209 = vmatpush1.xpose.msra.mxu0 0.0
    %210 = vmatprep.subr.mxu0 0.0
    %211 = vmatpush1.xpose.msra.mxu0 0.0
    %212 = vmatprep.subr.mxu0 0.0
    %213 = vmatpush1.xpose.msra.mxu0 0.0
    %214 = vmatprep.subr.mxu0 0.0
    %215 = vmatpush1.xpose.msra.mxu0 0.0
    %216 = vmatprep.subr.mxu0 0.0
    %217 = vmatpush1.xpose.msra.mxu0 0.0
    %218 = vmatprep.subr.mxu0 0.0
    %219 = vmatpush1.xpose.msra.mxu0 0.0
    %220 = vmatprep.subr.mxu0 0.0
    %221 = vmatpush1.xpose.msra.mxu0 0.0
    %222 = vmatprep.subr.mxu0 0.0
    %223 = vmatpush1.xpose.msra.mxu0 0.0
    %224 = vmatprep.subr.mxu0 0.0
    %225 = vmatpush1.xpose.msra.mxu0 0.0
    %226 = vmatprep.subr.mxu0 0.0
    %227 = vmatpush1.xpose.msra.mxu0 0.0
    %228 = vmatprep.subr.mxu0 0.0
    %229 = vmatpush1.xpose.msra.mxu0 0.0
    %230 = vmatprep.subr.mxu0 0.0
    %231 = vmatpush1.xpose.msra.mxu0 0.0
    %232 = vmatprep.subr.mxu0 0.0
    %233 = vmatpush1.xpose.msra.mxu0 0.0
    %234 = vmatprep.mubr.f32.mxu0 0.0
    %235 = vmatmul.mubr.f32.gmra.mrb[0].mxu0 %v144
    %v236 = vpop.f32.mrb[0].mxu0
    %v237 = vadd.f32 %v140, %v236
    %v238 = vpop.f32.mrb[0].mxu0
    %239 = vdwg.mxu0
    %vm240 = vcmask 31744
    %v241 = vsel %vm240, %v15, 0
    %v244 = vsel %vm240, %v17, 0
    %v247 = vsel %vm240, %v18, 0
    %v250 = vsel %vm240, %v19, 0
    %v253 = vsel %vm240, %v20, 0
    %255 = vmatprep.subr.mxu0 0.0
    %256 = vmatpush1.xpose.msra.mxu0 %v244
    %257 = vmatprep.subr.mxu0 0.0
    %258 = vmatpush1.xpose.msra.mxu0 %v247
    %259 = vmatprep.subr.mxu0 0.0
    %260 = vmatpush1.xpose.msra.mxu0 %v250
    %261 = vmatprep.subr.mxu0 0.0
    %262 = vmatpush1.xpose.msra.mxu0 %v253
    %263 = vmatprep.subr.mxu0 0.0
    %264 = vmatpush1.xpose.msra.mxu0 0.0
    %265 = vmatprep.subr.mxu0 0.0
    %266 = vmatpush1.xpose.msra.mxu0 0.0
    %267 = vmatprep.subr.mxu0 0.0
    %268 = vmatpush1.xpose.msra.mxu0 0.0
    %269 = vmatprep.subr.mxu0 0.0
    %270 = vmatpush1.xpose.msra.mxu0 0.0
    %271 = vmatprep.subr.mxu0 0.0
    %272 = vmatpush1.xpose.msra.mxu0 0.0
    %273 = vmatprep.subr.mxu0 0.0
    %274 = vmatpush1.xpose.msra.mxu0 0.0
    %275 = vmatprep.subr.mxu0 0.0
    %276 = vmatpush1.xpose.msra.mxu0 0.0
    %277 = vmatprep.subr.mxu0 0.0
    %278 = vmatpush1.xpose.msra.mxu0 0.0
    %279 = vmatprep.subr.mxu0 0.0
    %280 = vmatpush1.xpose.msra.mxu0 0.0
    %281 = vmatprep.subr.mxu0 0.0
    %282 = vmatpush1.xpose.msra.mxu0 0.0
    %283 = vmatprep.subr.mxu0 0.0
    %284 = vmatpush1.xpose.msra.mxu0 0.0
    %285 = vmatprep.subr.mxu0 0.0
    %286 = vmatpush1.xpose.msra.mxu0 0.0
    %287 = vmatprep.subr.mxu0 0.0
    %288 = vmatpush1.xpose.msra.mxu0 0.0
    %289 = vmatprep.subr.mxu0 0.0
    %290 = vmatpush1.xpose.msra.mxu0 0.0
    %291 = vmatprep.subr.mxu0 0.0
    %292 = vmatpush1.xpose.msra.mxu0 0.0
    %293 = vmatprep.subr.mxu0 0.0
    %294 = vmatpush1.xpose.msra.mxu0 0.0
    %295 = vmatprep.subr.mxu0 0.0
    %296 = vmatpush1.xpose.msra.mxu0 0.0
    %297 = vmatprep.subr.mxu0 0.0
    %298 = vmatpush1.xpose.msra.mxu0 0.0
    %299 = vmatprep.subr.mxu0 0.0
    %300 = vmatpush1.xpose.msra.mxu0 0.0
    %301 = vmatprep.subr.mxu0 0.0
    %302 = vmatpush1.xpose.msra.mxu0 0.0
    %303 = vmatprep.subr.mxu0 0.0
    %304 = vmatpush1.xpose.msra.mxu0 0.0
    %305 = vmatprep.subr.mxu0 0.0
    %306 = vmatpush1.xpose.msra.mxu0 0.0
    %307 = vmatprep.subr.mxu0 0.0
    %308 = vmatpush1.xpose.msra.mxu0 0.0
    %309 = vmatprep.subr.mxu0 0.0
    %310 = vmatpush1.xpose.msra.mxu0 0.0
    %311 = vmatprep.subr.mxu0 0.0
    %312 = vmatpush1.xpose.msra.mxu0 0.0
    %313 = vmatprep.subr.mxu0 0.0
    %314 = vmatpush1.xpose.msra.mxu0 0.0
    %315 = vmatprep.subr.mxu0 0.0
    %316 = vmatpush1.xpose.msra.mxu0 0.0
    %317 = vmatprep.subr.mxu0 0.0
    %318 = vmatpush1.xpose.msra.mxu0 0.0
    %319 = vmatprep.mubr.f32.mxu0 0.0
    %320 = vmatmul.mubr.f32.gmra.mrb[0].mxu0 %v241
    %v321 = vpop.f32.mrb[0].mxu0
    %v322 = vadd.f32 0.0, %v321
    %v323 = vpop.f32.mrb[0].mxu0
    %324 = vdwg.mxu0
    %v325 = vlaneseq
    %v326 = vshrl.u32 %v325, 7
    %v327 = vsub.s32 0, %v326
    %v328 = vrot.slane %v16, %v327
    %v329 = vsub.f32 %v322, %v328
    %v330 = vand.u32 2147483647, %v329
    %vm331 = vcmask 261120
    %v333 = vsel %vm331, %v330, 0
    %335 = vmatprep.subr.mxu0 0.0
    %336 = vmatpush1.msra.mxu0 %v17
    %337 = vmatprep.subr.mxu0 0.0
    %338 = vmatpush1.msra.mxu0 %v18
    %339 = vmatprep.subr.mxu0 0.0
    %340 = vmatpush1.msra.mxu0 %v19
    %341 = vmatprep.subr.mxu0 0.0
    %342 = vmatpush1.msra.mxu0 %v20
    %343 = vmatprep.subr.mxu0 0.0
    %344 = vmatpush1.msra.mxu0 0.0
    %345 = vmatprep.subr.mxu0 0.0
    %346 = vmatpush1.msra.mxu0 0.0
    %347 = vmatprep.subr.mxu0 0.0
    %348 = vmatpush1.msra.mxu0 0.0
    %349 = vmatprep.subr.mxu0 0.0
    %350 = vmatpush1.msra.mxu0 0.0
    %351 = vmatprep.subr.mxu0 0.0
    %352 = vmatpush1.msra.mxu0 0.0
    %353 = vmatprep.subr.mxu0 0.0
    %354 = vmatpush1.msra.mxu0 0.0
    %355 = vmatprep.subr.mxu0 0.0
    %356 = vmatpush1.msra.mxu0 0.0
    %357 = vmatprep.subr.mxu0 0.0
    %358 = vmatpush1.msra.mxu0 0.0
    %359 = vmatprep.subr.mxu0 0.0
    %360 = vmatpush1.msra.mxu0 0.0
    %361 = vmatprep.subr.mxu0 0.0
    %362 = vmatpush1.msra.mxu0 0.0
    %363 = vmatprep.subr.mxu0 0.0
    %364 = vmatpush1.msra.mxu0 0.0
    %365 = vmatprep.subr.mxu0 0.0
    %366 = vmatpush1.msra.mxu0 0.0
    %367 = vmatprep.subr.mxu0 0.0
    %368 = vmatpush1.msra.mxu0 0.0
    %369 = vmatprep.subr.mxu0 0.0
    %370 = vmatpush1.msra.mxu0 0.0
    %371 = vmatprep.subr.mxu0 0.0
    %372 = vmatpush1.msra.mxu0 0.0
    %373 = vmatprep.subr.mxu0 0.0
    %374 = vmatpush1.msra.mxu0 0.0
    %375 = vmatprep.subr.mxu0 0.0
    %376 = vmatpush1.msra.mxu0 0.0
    %377 = vmatprep.subr.mxu0 0.0
    %378 = vmatpush1.msra.mxu0 0.0
    %379 = vmatprep.subr.mxu0 0.0
    %380 = vmatpush1.msra.mxu0 0.0
    %381 = vmatprep.subr.mxu0 0.0
    %382 = vmatpush1.msra.mxu0 0.0
    %383 = vmatprep.subr.mxu0 0.0
    %384 = vmatpush1.msra.mxu0 0.0
    %385 = vmatprep.subr.mxu0 0.0
    %386 = vmatpush1.msra.mxu0 0.0
    %387 = vmatprep.subr.mxu0 0.0
    %388 = vmatpush1.msra.mxu0 0.0
    %389 = vmatprep.subr.mxu0 0.0
    %390 = vmatpush1.msra.mxu0 0.0
    %391 = vmatprep.subr.mxu0 0.0
    %392 = vmatpush1.msra.mxu0 0.0
    %393 = vmatprep.subr.mxu0 0.0
    %394 = vmatpush1.msra.mxu0 0.0
    %395 = vmatprep.subr.mxu0 0.0
    %396 = vmatpush1.msra.mxu0 0.0
    %397 = vmatprep.subr.mxu0 0.0
    %398 = vmatpush1.msra.mxu0 0.0
    %399 = vmatprep.mubr.f32.mxu0 0.0
    %400 = vmatmul.mubr.f32.gmra.mrb[0].mxu0 %v333
    %v401 = vpop.f32.mrb[0].mxu0
    %v402 = vadd.f32 0.0, %v401
    %v403 = vpop.f32.mrb[0].mxu0
    %404 = vdwg.mxu0
    %vm405 = vcmp.gt.f32.partialorder %v402, 1e-06
    %v406 = vsel %vm405, %v402, 1.0
    %v408 = vsel %vm240, %v406, 0
    %410 = vmatprep.subr.mxu0 0.0
    %411 = vmatpush1.xpose.msra.mxu0 %v244
    %412 = vmatprep.subr.mxu0 0.0
    %413 = vmatpush1.xpose.msra.mxu0 %v247
    %414 = vmatprep.subr.mxu0 0.0
    %415 = vmatpush1.xpose.msra.mxu0 %v250
    %416 = vmatprep.subr.mxu0 0.0
    %417 = vmatpush1.xpose.msra.mxu0 %v253
    %418 = vmatprep.subr.mxu0 0.0
    %419 = vmatpush1.xpose.msra.mxu0 0.0
    %420 = vmatprep.subr.mxu0 0.0
    %421 = vmatpush1.xpose.msra.mxu0 0.0
    %422 = vmatprep.subr.mxu0 0.0
    %423 = vmatpush1.xpose.msra.mxu0 0.0
    %424 = vmatprep.subr.mxu0 0.0
    %425 = vmatpush1.xpose.msra.mxu0 0.0
    %426 = vmatprep.subr.mxu0 0.0
    %427 = vmatpush1.xpose.msra.mxu0 0.0
    %428 = vmatprep.subr.mxu0 0.0
    %429 = vmatpush1.xpose.msra.mxu0 0.0
    %430 = vmatprep.subr.mxu0 0.0
    %431 = vmatpush1.xpose.msra.mxu0 0.0
    %432 = vmatprep.subr.mxu0 0.0
    %433 = vmatpush1.xpose.msra.mxu0 0.0
    %434 = vmatprep.subr.mxu0 0.0
    %435 = vmatpush1.xpose.msra.mxu0 0.0
    %436 = vmatprep.subr.mxu0 0.0
    %437 = vmatpush1.xpose.msra.mxu0 0.0
    %438 = vmatprep.subr.mxu0 0.0
    %439 = vmatpush1.xpose.msra.mxu0 0.0
    %440 = vmatprep.subr.mxu0 0.0
    %441 = vmatpush1.xpose.msra.mxu0 0.0
    %442 = vmatprep.subr.mxu0 0.0
    %443 = vmatpush1.xpose.msra.mxu0 0.0
    %444 = vmatprep.subr.mxu0 0.0
    %445 = vmatpush1.xpose.msra.mxu0 0.0
    %446 = vmatprep.subr.mxu0 0.0
    %447 = vmatpush1.xpose.msra.mxu0 0.0
    %448 = vmatprep.subr.mxu0 0.0
    %449 = vmatpush1.xpose.msra.mxu0 0.0
    %450 = vmatprep.subr.mxu0 0.0
    %451 = vmatpush1.xpose.msra.mxu0 0.0
    %452 = vmatprep.subr.mxu0 0.0
    %453 = vmatpush1.xpose.msra.mxu0 0.0
    %454 = vmatprep.subr.mxu0 0.0
    %455 = vmatpush1.xpose.msra.mxu0 0.0
    %456 = vmatprep.subr.mxu0 0.0
    %457 = vmatpush1.xpose.msra.mxu0 0.0
    %458 = vmatprep.subr.mxu0 0.0
    %459 = vmatpush1.xpose.msra.mxu0 0.0
    %460 = vmatprep.subr.mxu0 0.0
    %461 = vmatpush1.xpose.msra.mxu0 0.0
    %462 = vmatprep.subr.mxu0 0.0
    %463 = vmatpush1.xpose.msra.mxu0 0.0
    %464 = vmatprep.subr.mxu0 0.0
    %465 = vmatpush1.xpose.msra.mxu0 0.0
    %466 = vmatprep.subr.mxu0 0.0
    %467 = vmatpush1.xpose.msra.mxu0 0.0
    %468 = vmatprep.subr.mxu0 0.0
    %469 = vmatpush1.xpose.msra.mxu0 0.0
    %470 = vmatprep.subr.mxu0 0.0
    %471 = vmatpush1.xpose.msra.mxu0 0.0
    %472 = vmatprep.subr.mxu0 0.0
    %473 = vmatpush1.xpose.msra.mxu0 0.0
    %474 = vmatprep.mubr.f32.mxu0 0.0
    %475 = vmatmul.mubr.f32.gmra.mrb[0].mxu0 %v408
    %v476 = vpop.f32.mrb[0].mxu0
    %v477 = vadd.f32 0.0, %v476
    %v478 = vpop.f32.mrb[0].mxu0
    %479 = vdwg.mxu0
    %v480 = vsel %vm22, %v477, %v330
    %v481 = vsel %vm331, %v480, 0.0
    %v482 = vrot.slane %v481, 4
    %v483 = vadd.f32 %v481, %v482
    %v484 = vrot.slane %v483, 2
    %v485 = vadd.f32 %v483, %v484
    %v486 = vrot.slane %v485, 1
    %v487 = vadd.f32 %v485, %v486
    %v489 = vsel %vm331, %v487, 0
    %491 = vmatprep.subr.mxu0 0.0
    %492 = vmatpush1.msra.mxu0 %v17
    %493 = vmatprep.subr.mxu0 0.0
    %494 = vmatpush1.msra.mxu0 %v18
    %495 = vmatprep.subr.mxu0 0.0
    %496 = vmatpush1.msra.mxu0 %v19
    %497 = vmatprep.subr.mxu0 0.0
    %498 = vmatpush1.msra.mxu0 %v20
    %499 = vmatprep.subr.mxu0 0.0
    %500 = vmatpush1.msra.mxu0 0.0
    %501 = vmatprep.subr.mxu0 0.0
    %502 = vmatpush1.msra.mxu0 0.0
    %503 = vmatprep.subr.mxu0 0.0
    %504 = vmatpush1.msra.mxu0 0.0
    %505 = vmatprep.subr.mxu0 0.0
    %506 = vmatpush1.msra.mxu0 0.0
    %507 = vmatprep.subr.mxu0 0.0
    %508 = vmatpush1.msra.mxu0 0.0
    %509 = vmatprep.subr.mxu0 0.0
    %510 = vmatpush1.msra.mxu0 0.0
    %511 = vmatprep.subr.mxu0 0.0
    %512 = vmatpush1.msra.mxu0 0.0
    %513 = vmatprep.subr.mxu0 0.0
    %514 = vmatpush1.msra.mxu0 0.0
    %515 = vmatprep.subr.mxu0 0.0
    %516 = vmatpush1.msra.mxu0 0.0
    %517 = vmatprep.subr.mxu0 0.0
    %518 = vmatpush1.msra.mxu0 0.0
    %519 = vmatprep.subr.mxu0 0.0
    %520 = vmatpush1.msra.mxu0 0.0
    %521 = vmatprep.subr.mxu0 0.0
    %522 = vmatpush1.msra.mxu0 0.0
    %523 = vmatprep.subr.mxu0 0.0
    %524 = vmatpush1.msra.mxu0 0.0
    %525 = vmatprep.subr.mxu0 0.0
    %526 = vmatpush1.msra.mxu0 0.0
    %527 = vmatprep.subr.mxu0 0.0
    %528 = vmatpush1.msra.mxu0 0.0
    %529 = vmatprep.subr.mxu0 0.0
    %530 = vmatpush1.msra.mxu0 0.0
    %531 = vmatprep.subr.mxu0 0.0
    %532 = vmatpush1.msra.mxu0 0.0
    %533 = vmatprep.subr.mxu0 0.0
    %534 = vmatpush1.msra.mxu0 0.0
    %535 = vmatprep.subr.mxu0 0.0
    %536 = vmatpush1.msra.mxu0 0.0
    %537 = vmatprep.subr.mxu0 0.0
    %538 = vmatpush1.msra.mxu0 0.0
    %539 = vmatprep.subr.mxu0 0.0
    %540 = vmatpush1.msra.mxu0 0.0
    %541 = vmatprep.subr.mxu0 0.0
    %542 = vmatpush1.msra.mxu0 0.0
    %543 = vmatprep.subr.mxu0 0.0
    %544 = vmatpush1.msra.mxu0 0.0
    %545 = vmatprep.subr.mxu0 0.0
    %546 = vmatpush1.msra.mxu0 0.0
    %547 = vmatprep.subr.mxu0 0.0
    %548 = vmatpush1.msra.mxu0 0.0
    %549 = vmatprep.subr.mxu0 0.0
    %550 = vmatpush1.msra.mxu0 0.0
    %551 = vmatprep.subr.mxu0 0.0
    %552 = vmatpush1.msra.mxu0 0.0
    %553 = vmatprep.subr.mxu0 0.0
    %554 = vmatpush1.msra.mxu0 0.0
    %555 = vmatprep.mubr.f32.mxu0 0.0
    %556 = vmatmul.mubr.f32.gmra.mrb[0].mxu0 %v489
    %v557 = vpop.f32.mrb[0].mxu0
    %v558 = vadd.f32 0.0, %v557
    %v559 = vpop.f32.mrb[0].mxu0
    %560 = vdwg.mxu0
    %v561 = vmul.f32 %v558, 0.015625
    %v563 = vsel %vm240, %v561, 0
    %565 = vmatprep.subr.mxu0 0.0
    %566 = vmatpush1.xpose.msra.mxu0 %v244
    %567 = vmatprep.subr.mxu0 0.0
    %568 = vmatpush1.xpose.msra.mxu0 %v247
    %569 = vmatprep.subr.mxu0 0.0
    %570 = vmatpush1.xpose.msra.mxu0 %v250
    %571 = vmatprep.subr.mxu0 0.0
    %572 = vmatpush1.xpose.msra.mxu0 %v253
    %573 = vmatprep.subr.mxu0 0.0
    %574 = vmatpush1.xpose.msra.mxu0 0.0
    %575 = vmatprep.subr.mxu0 0.0
    %576 = vmatpush1.xpose.msra.mxu0 0.0
    %577 = vmatprep.subr.mxu0 0.0
    %578 = vmatpush1.xpose.msra.mxu0 0.0
    %579 = vmatprep.subr.mxu0 0.0
    %580 = vmatpush1.xpose.msra.mxu0 0.0
    %581 = vmatprep.subr.mxu0 0.0
    %582 = vmatpush1.xpose.msra.mxu0 0.0
    %583 = vmatprep.subr.mxu0 0.0
    %584 = vmatpush1.xpose.msra.mxu0 0.0
    %585 = vmatprep.subr.mxu0 0.0
    %586 = vmatpush1.xpose.msra.mxu0 0.0
    %587 = vmatprep.subr.mxu0 0.0
    %588 = vmatpush1.xpose.msra.mxu0 0.0
    %589 = vmatprep.subr.mxu0 0.0
    %590 = vmatpush1.xpose.msra.mxu0 0.0
    %591 = vmatprep.subr.mxu0 0.0
    %592 = vmatpush1.xpose.msra.mxu0 0.0
    %593 = vmatprep.subr.mxu0 0.0
    %594 = vmatpush1.xpose.msra.mxu0 0.0
    %595 = vmatprep.subr.mxu0 0.0
    %596 = vmatpush1.xpose.msra.mxu0 0.0
    %597 = vmatprep.subr.mxu0 0.0
    %598 = vmatpush1.xpose.msra.mxu0 0.0
    %599 = vmatprep.subr.mxu0 0.0
    %600 = vmatpush1.xpose.msra.mxu0 0.0
    %601 = vmatprep.subr.mxu0 0.0
    %602 = vmatpush1.xpose.msra.mxu0 0.0
    %603 = vmatprep.subr.mxu0 0.0
    %604 = vmatpush1.xpose.msra.mxu0 0.0
    %605 = vmatprep.subr.mxu0 0.0
    %606 = vmatpush1.xpose.msra.mxu0 0.0
    %607 = vmatprep.subr.mxu0 0.0
    %608 = vmatpush1.xpose.msra.mxu0 0.0
    %609 = vmatprep.subr.mxu0 0.0
    %610 = vmatpush1.xpose.msra.mxu0 0.0
    %611 = vmatprep.subr.mxu0 0.0
    %612 = vmatpush1.xpose.msra.mxu0 0.0
    %613 = vmatprep.subr.mxu0 0.0
    %614 = vmatpush1.xpose.msra.mxu0 0.0
    %615 = vmatprep.subr.mxu0 0.0
    %616 = vmatpush1.xpose.msra.mxu0 0.0
    %617 = vmatprep.subr.mxu0 0.0
    %618 = vmatpush1.xpose.msra.mxu0 0.0
    %619 = vmatprep.subr.mxu0 0.0
    %620 = vmatpush1.xpose.msra.mxu0 0.0
    %621 = vmatprep.subr.mxu0 0.0
    %622 = vmatpush1.xpose.msra.mxu0 0.0
    %623 = vmatprep.subr.mxu0 0.0
    %624 = vmatpush1.xpose.msra.mxu0 0.0
    %625 = vmatprep.subr.mxu0 0.0
    %626 = vmatpush1.xpose.msra.mxu0 0.0
    %627 = vmatprep.subr.mxu0 0.0
    %628 = vmatpush1.xpose.msra.mxu0 0.0
    %629 = vmatprep.mubr.f32.mxu0 0.0
    %630 = vmatmul.mubr.f32.gmra.mrb[0].mxu0 %v563
    %v631 = vpop.f32.mrb[0].mxu0
    %v632 = vadd.f32 0.0, %v631
    %v633 = vpop.f32.mrb[0].mxu0
    %634 = vdwg.mxu0
    %v635 = vlaneseq
    %v636 = vshrl.u32 %v635, 7
    %v637 = vsub.s32 0, %v636
    %v638 = vrot.slane %v632, %v637
    %v639 = vsub.f32 %v480, %v638
    %v640 = vmul.f32 %v639, %v639
    %v641 = vsel %vm331, %v640, 0.0
    %v642 = vrot.slane %v641, 4
    %v643 = vadd.f32 %v641, %v642
    %v644 = vrot.slane %v643, 2
    %v645 = vadd.f32 %v643, %v644
    %v646 = vrot.slane %v645, 1
    %v647 = vadd.f32 %v645, %v646
    %v649 = vsel %vm331, %v647, 0
    %651 = vmatprep.subr.mxu0 0.0
    %652 = vmatpush1.msra.mxu0 %v17
    %653 = vmatprep.subr.mxu0 0.0
    %654 = vmatpush1.msra.mxu0 %v18
    %655 = vmatprep.subr.mxu0 0.0
    %656 = vmatpush1.msra.mxu0 %v19
    %657 = vmatprep.subr.mxu0 0.0
    %658 = vmatpush1.msra.mxu0 %v20
    %659 = vmatprep.subr.mxu0 0.0
    %660 = vmatpush1.msra.mxu0 0.0
    %661 = vmatprep.subr.mxu0 0.0
    %662 = vmatpush1.msra.mxu0 0.0
    %663 = vmatprep.subr.mxu0 0.0
    %664 = vmatpush1.msra.mxu0 0.0
    %665 = vmatprep.subr.mxu0 0.0
    %666 = vmatpush1.msra.mxu0 0.0
    %667 = vmatprep.subr.mxu0 0.0
    %668 = vmatpush1.msra.mxu0 0.0
    %669 = vmatprep.subr.mxu0 0.0
    %670 = vmatpush1.msra.mxu0 0.0
    %671 = vmatprep.subr.mxu0 0.0
    %672 = vmatpush1.msra.mxu0 0.0
    %673 = vmatprep.subr.mxu0 0.0
    %674 = vmatpush1.msra.mxu0 0.0
    %675 = vmatprep.subr.mxu0 0.0
    %676 = vmatpush1.msra.mxu0 0.0
    %677 = vmatprep.subr.mxu0 0.0
    %678 = vmatpush1.msra.mxu0 0.0
    %679 = vmatprep.subr.mxu0 0.0
    %680 = vmatpush1.msra.mxu0 0.0
    %681 = vmatprep.subr.mxu0 0.0
    %682 = vmatpush1.msra.mxu0 0.0
    %683 = vmatprep.subr.mxu0 0.0
    %684 = vmatpush1.msra.mxu0 0.0
    %685 = vmatprep.subr.mxu0 0.0
    %686 = vmatpush1.msra.mxu0 0.0
    %687 = vmatprep.subr.mxu0 0.0
    %688 = vmatpush1.msra.mxu0 0.0
    %689 = vmatprep.subr.mxu0 0.0
    %690 = vmatpush1.msra.mxu0 0.0
    %691 = vmatprep.subr.mxu0 0.0
    %692 = vmatpush1.msra.mxu0 0.0
    %693 = vmatprep.subr.mxu0 0.0
    %694 = vmatpush1.msra.mxu0 0.0
    %695 = vmatprep.subr.mxu0 0.0
    %696 = vmatpush1.msra.mxu0 0.0
    %697 = vmatprep.subr.mxu0 0.0
    %698 = vmatpush1.msra.mxu0 0.0
    %699 = vmatprep.subr.mxu0 0.0
    %700 = vmatpush1.msra.mxu0 0.0
    %701 = vmatprep.subr.mxu0 0.0
    %702 = vmatpush1.msra.mxu0 0.0
    %703 = vmatprep.subr.mxu0 0.0
    %704 = vmatpush1.msra.mxu0 0.0
    %705 = vmatprep.subr.mxu0 0.0
    %706 = vmatpush1.msra.mxu0 0.0
    %707 = vmatprep.subr.mxu0 0.0
    %708 = vmatpush1.msra.mxu0 0.0
    %709 = vmatprep.subr.mxu0 0.0
    %710 = vmatpush1.msra.mxu0 0.0
    %711 = vmatprep.subr.mxu0 0.0
    %712 = vmatpush1.msra.mxu0 0.0
    %713 = vmatprep.subr.mxu0 0.0
    %714 = vmatpush1.msra.mxu0 0.0
    %715 = vmatprep.mubr.f32.mxu0 0.0
    %716 = vmatmul.mubr.f32.gmra.mrb[0].mxu0 %v649
    %v717 = vpop.f32.mrb[0].mxu0
    %v718 = vadd.f32 0.0, %v717
    %v719 = vpop.f32.mrb[0].mxu0
    %720 = vdwg.mxu0
    %v721 = vmul.f32 %v718, 0.015625
    %v722 = vadd.f32 %v721, 1e-05
    %v723 = vrsqrt.pop %v722
    %v725 = vsel %vm240, %v723, 0
    %727 = vmatprep.subr.mxu0 0.0
    %728 = vmatpush1.xpose.msra.mxu0 %v244
    %729 = vmatprep.subr.mxu0 0.0
    %730 = vmatpush1.xpose.msra.mxu0 %v247
    %731 = vmatprep.subr.mxu0 0.0
    %732 = vmatpush1.xpose.msra.mxu0 %v250
    %733 = vmatprep.subr.mxu0 0.0
    %734 = vmatpush1.xpose.msra.mxu0 %v253
    %735 = vmatprep.subr.mxu0 0.0
    %736 = vmatpush1.xpose.msra.mxu0 0.0
    %737 = vmatprep.subr.mxu0 0.0
    %738 = vmatpush1.xpose.msra.mxu0 0.0
    %739 = vmatprep.subr.mxu0 0.0
    %740 = vmatpush1.xpose.msra.mxu0 0.0
    %741 = vmatprep.subr.mxu0 0.0
    %742 = vmatpush1.xpose.msra.mxu0 0.0
    %743 = vmatprep.subr.mxu0 0.0
    %744 = vmatpush1.xpose.msra.mxu0 0.0
    %745 = vmatprep.subr.mxu0 0.0
    %746 = vmatpush1.xpose.msra.mxu0 0.0
    %747 = vmatprep.subr.mxu0 0.0
    %748 = vmatpush1.xpose.msra.mxu0 0.0
    %749 = vmatprep.subr.mxu0 0.0
    %750 = vmatpush1.xpose.msra.mxu0 0.0
    %751 = vmatprep.subr.mxu0 0.0
    %752 = vmatpush1.xpose.msra.mxu0 0.0
    %753 = vmatprep.subr.mxu0 0.0
    %754 = vmatpush1.xpose.msra.mxu0 0.0
    %755 = vmatprep.subr.mxu0 0.0
    %756 = vmatpush1.xpose.msra.mxu0 0.0
    %757 = vmatprep.subr.mxu0 0.0
    %758 = vmatpush1.xpose.msra.mxu0 0.0
    %759 = vmatprep.subr.mxu0 0.0
    %760 = vmatpush1.xpose.msra.mxu0 0.0
    %761 = vmatprep.subr.mxu0 0.0
    %762 = vmatpush1.xpose.msra.mxu0 0.0
    %763 = vmatprep.subr.mxu0 0.0
    %764 = vmatpush1.xpose.msra.mxu0 0.0
    %765 = vmatprep.subr.mxu0 0.0
    %766 = vmatpush1.xpose.msra.mxu0 0.0
    %767 = vmatprep.subr.mxu0 0.0
    %768 = vmatpush1.xpose.msra.mxu0 0.0
    %769 = vmatprep.subr.mxu0 0.0
    %770 = vmatpush1.xpose.msra.mxu0 0.0
    %771 = vmatprep.subr.mxu0 0.0
    %772 = vmatpush1.xpose.msra.mxu0 0.0
    %773 = vmatprep.subr.mxu0 0.0
    %774 = vmatpush1.xpose.msra.mxu0 0.0
    %775 = vmatprep.subr.mxu0 0.0
    %776 = vmatpush1.xpose.msra.mxu0 0.0
    %777 = vmatprep.subr.mxu0 0.0
    %778 = vmatpush1.xpose.msra.mxu0 0.0
    %779 = vmatprep.subr.mxu0 0.0
    %780 = vmatpush1.xpose.msra.mxu0 0.0
    %781 = vmatprep.subr.mxu0 0.0
    %782 = vmatpush1.xpose.msra.mxu0 0.0
    %783 = vmatprep.subr.mxu0 0.0
    %784 = vmatpush1.xpose.msra.mxu0 0.0
    %785 = vmatprep.subr.mxu0 0.0
    %786 = vmatpush1.xpose.msra.mxu0 0.0
    %787 = vmatprep.subr.mxu0 0.0
    %788 = vmatpush1.xpose.msra.mxu0 0.0
    %789 = vmatprep.subr.mxu0 0.0
    %790 = vmatpush1.xpose.msra.mxu0 0.0
    %791 = vmatprep.mubr.f32.mxu0 0.0
    %792 = vmatmul.mubr.f32.gmra.mrb[0].mxu0 %v725
    %v793 = vpop.f32.mrb[0].mxu0
    %v794 = vadd.f32 0.0, %v793
    %v795 = vpop.f32.mrb[0].mxu0
    %796 = vdwg.mxu0
    %v797 = vlaneseq
    %v798 = vshrl.u32 %v797, 7
    %v799 = vsub.s32 0, %v798
    %v800 = vrot.slane %v794, %v799
    %v801 = vmul.f32 %v639, %v800
    %v802 = vld [vmem:[%s1] sm:$0xff]
    %v803 = vld [vmem:[%s1 + $0x8] sm:$0xff]
    %v804 = vld [vmem:[%s1 + $0x10] sm:$0xff]
    %v805 = vld [vmem:[%s1 + $0x18] sm:$0xff]
    %v806 = vld [vmem:[%s1 + $0x20] sm:$0xff]
    %v807 = vld [vmem:[%s1 + $0x28] sm:$0xff]
    %v808 = vld [vmem:[%s1 + $0x30] sm:$0xff]
    %v809 = vld [vmem:[%s1 + $0x38] sm:$0xff]
    %v810 = vld [vmem:[%s2] ss:$8 sm:$0x3]
    %v812 = vlaneseq
    %v813 = vshrl.u32 %v812, 7
    %v814 = vsub.s32 0, %v813
    %v815 = vrot.slane %v810, %v814
    %v816 = vlaneseq
    %v817 = vshrl.u32 %v816, 7
    %v818 = vsub.s32 1, %v817
    %v819 = vrot.slane %v810, %v818
    %v823 = vsel %vm331, %v801, 0
    %825 = vmatprep.subr.mxu0 %v803
    %826 = vmatpush1.msra.mxu0 %v802
    %827 = vmatprep.subr.mxu0 %v805
    %828 = vmatpush1.msra.mxu0 %v804
    %829 = vmatprep.subr.mxu0 %v807
    %830 = vmatpush1.msra.mxu0 %v806
    %831 = vmatprep.subr.mxu0 %v809
    %832 = vmatpush1.msra.mxu0 %v808
    %833 = vmatprep.subr.mxu0 0.0
    %834 = vmatpush1.msra.mxu0 0.0
    %835 = vmatprep.subr.mxu0 0.0
    %836 = vmatpush1.msra.mxu0 0.0
    %837 = vmatprep.subr.mxu0 0.0
    %838 = vmatpush1.msra.mxu0 0.0
    %839 = vmatprep.subr.mxu0 0.0
    %840 = vmatpush1.msra.mxu0 0.0
    %841 = vmatprep.subr.mxu0 0.0
    %842 = vmatpush1.msra.mxu0 0.0
    %843 = vmatprep.subr.mxu0 0.0
    %844 = vmatpush1.msra.mxu0 0.0
    %845 = vmatprep.subr.mxu0 0.0
    %846 = vmatpush1.msra.mxu0 0.0
    %847 = vmatprep.subr.mxu0 0.0
    %848 = vmatpush1.msra.mxu0 0.0
    %849 = vmatprep.subr.mxu0 0.0
    %850 = vmatpush1.msra.mxu0 0.0
    %851 = vmatprep.subr.mxu0 0.0
    %852 = vmatpush1.msra.mxu0 0.0
    %853 = vmatprep.subr.mxu0 0.0
    %854 = vmatpush1.msra.mxu0 0.0
    %855 = vmatprep.subr.mxu0 0.0
    %856 = vmatpush1.msra.mxu0 0.0
    %857 = vmatprep.subr.mxu0 0.0
    %858 = vmatpush1.msra.mxu0 0.0
    %859 = vmatprep.subr.mxu0 0.0
    %860 = vmatpush1.msra.mxu0 0.0
    %861 = vmatprep.subr.mxu0 0.0
    %862 = vmatpush1.msra.mxu0 0.0
    %863 = vmatprep.subr.mxu0 0.0
    %864 = vmatpush1.msra.mxu0 0.0
    %865 = vmatprep.subr.mxu0 0.0
    %866 = vmatpush1.msra.mxu0 0.0
    %867 = vmatprep.subr.mxu0 0.0
    %868 = vmatpush1.msra.mxu0 0.0
    %869 = vmatprep.subr.mxu0 0.0
    %870 = vmatpush1.msra.mxu0 0.0
    %871 = vmatprep.subr.mxu0 0.0
    %872 = vmatpush1.msra.mxu0 0.0
    %873 = vmatprep.subr.mxu0 0.0
    %874 = vmatpush1.msra.mxu0 0.0
    %875 = vmatprep.subr.mxu0 0.0
    %876 = vmatpush1.msra.mxu0 0.0
    %877 = vmatprep.subr.mxu0 0.0
    %878 = vmatpush1.msra.mxu0 0.0
    %879 = vmatprep.subr.mxu0 0.0
    %880 = vmatpush1.msra.mxu0 0.0
    %881 = vmatprep.subr.mxu0 0.0
    %882 = vmatpush1.msra.mxu0 0.0
    %883 = vmatprep.subr.mxu0 0.0
    %884 = vmatpush1.msra.mxu0 0.0
    %885 = vmatprep.subr.mxu0 0.0
    %886 = vmatpush1.msra.mxu0 0.0
    %887 = vmatprep.subr.mxu0 0.0
    %888 = vmatpush1.msra.mxu0 0.0
    %889 = vmatprep.mubr.f32.mxu0 0.0
    %890 = vmatmul.mubr.f32.gmra.mrb[0].mxu0 %v823
    %v891 = vpop.f32.mrb[0].mxu0
    %v892 = vadd.f32 %v815, %v891
    %v893 = vpop.f32.mrb[0].mxu0
    %v894 = vadd.f32 %v819, %v893
    %895 = vdwg.mxu0
    %vm896 = vcmask 523264
    %v898 = vsel %vm896, %v892, 0
    %900 = vmatprep.subr.mxu0 0.0
    %901 = vmatpush1.xpose.msra.mxu0 %v898
    %902 = vmatprep.subr.mxu0 0.0
    %903 = vmatpush1.xpose.msra.mxu0 0.0
    %904 = vmatprep.subr.mxu0 0.0
    %905 = vmatpush1.xpose.msra.mxu0 0.0
    %906 = vmatprep.subr.mxu0 0.0
    %907 = vmatpush1.xpose.msra.mxu0 0.0
    %908 = vmatprep.subr.mxu0 0.0
    %909 = vmatpush1.xpose.msra.mxu0 0.0
    %910 = vmatprep.subr.mxu0 0.0
    %911 = vmatpush1.xpose.msra.mxu0 0.0
    %912 = vmatprep.subr.mxu0 0.0
    %913 = vmatpush1.xpose.msra.mxu0 0.0
    %914 = vmatprep.subr.mxu0 0.0
    %915 = vmatpush1.xpose.msra.mxu0 0.0
    %916 = vmatprep.subr.mxu0 0.0
    %917 = vmatpush1.xpose.msra.mxu0 0.0
    %918 = vmatprep.subr.mxu0 0.0
    %919 = vmatpush1.xpose.msra.mxu0 0.0
    %920 = vmatprep.subr.mxu0 0.0
    %921 = vmatpush1.xpose.msra.mxu0 0.0
    %922 = vmatprep.subr.mxu0 0.0
    %923 = vmatpush1.xpose.msra.mxu0 0.0
    %924 = vmatprep.subr.mxu0 0.0
    %925 = vmatpush1.xpose.msra.mxu0 0.0
    %926 = vmatprep.subr.mxu0 0.0
    %927 = vmatpush1.xpose.msra.mxu0 0.0
    %928 = vmatprep.subr.mxu0 0.0
    %929 = vmatpush1.xpose.msra.mxu0 0.0
    %930 = vmatprep.subr.mxu0 0.0
    %931 = vmatpush1.xpose.msra.mxu0 0.0
    %932 = vmatprep.subr.mxu0 0.0
    %933 = vmatpush1.xpose.msra.mxu0 0.0
    %934 = vmatprep.subr.mxu0 0.0
    %935 = vmatpush1.xpose.msra.mxu0 0.0
    %936 = vmatprep.subr.mxu0 0.0
    %937 = vmatpush1.xpose.msra.mxu0 0.0
    %938 = vmatprep.subr.mxu0 0.0
    %939 = vmatpush1.xpose.msra.mxu0 0.0
    %940 = vmatprep.subr.mxu0 0.0
    %941 = vmatpush1.xpose.msra.mxu0 0.0
    %942 = vmatprep.subr.mxu0 0.0
    %943 = vmatpush1.xpose.msra.mxu0 0.0
    %944 = vmatprep.subr.mxu0 0.0
    %945 = vmatpush1.xpose.msra.mxu0 0.0
    %946 = vmatprep.subr.mxu0 0.0
    %947 = vmatpush1.xpose.msra.mxu0 0.0
    %948 = vmatprep.subr.mxu0 0.0
    %949 = vmatpush1.xpose.msra.mxu0 0.0
    %950 = vmatprep.subr.mxu0 0.0
    %951 = vmatpush1.xpose.msra.mxu0 0.0
    %952 = vmatprep.subr.mxu0 0.0
    %953 = vmatpush1.xpose.msra.mxu0 0.0
    %954 = vmatprep.subr.mxu0 0.0
    %955 = vmatpush1.xpose.msra.mxu0 0.0
    %956 = vmatprep.subr.mxu0 0.0
    %957 = vmatpush1.xpose.msra.mxu0 0.0
    %958 = vmatprep.subr.mxu0 0.0
    %959 = vmatpush1.xpose.msra.mxu0 0.0
    %960 = vmatprep.subr.mxu0 0.0
    %961 = vmatpush1.xpose.msra.mxu0 0.0
    %962 = vmatprep.subr.mxu0 0.0
    %963 = vmatpush1.xpose.msra.mxu0 0.0
    %964 = vmatprep.mubr.f32.mxu0 0.0
    %965 = vmatmul.mubr.f32.gmra.mrb[0].mxu0 %v898
    %v966 = vpop.f32.mrb[0].mxu0
    %v967 = vadd.f32 0.0, %v966
    %v968 = vpop.f32.mrb[0].mxu0
    %969 = vdwg.mxu0
    %vm970 = vcmask 64512
    %v971 = vsel %vm970, %v967, -inf
    %972 = vmax.xlane.f32.xlu0 %v971
    %v973 = vpop.xlane.xlu0 %972
    %v974 = vsub.f32 %v967, %v973
    %v975 = vmul.f32 %v974, 1.442695
    %v976 = vpow.pop %v975
    %v977 = vsel %vm970, %v976, 0.0
    %978 = vadd.xlane.f32.xlu0 %v977
    %v979 = vpop.xlane.xlu0 %978
    %v980 = vrcp.pop %v979
    %v981 = vmul.f32 %v976, %v980
    %v982 = vmul.f32 %v981, %v894
    %983 = vrot.lane.b32.xlu0 %v892, 64
    %v984 = vpop.permute.xlu0 %983
    %v985 = vsel %vm896, %v984, 0
    %987 = vmatprep.subr.mxu0 0.0
    %988 = vmatpush1.xpose.msra.mxu0 %v985
    %989 = vmatprep.subr.mxu0 0.0
    %990 = vmatpush1.xpose.msra.mxu0 0.0
    %991 = vmatprep.subr.mxu0 0.0
    %992 = vmatpush1.xpose.msra.mxu0 0.0
    %993 = vmatprep.subr.mxu0 0.0
    %994 = vmatpush1.xpose.msra.mxu0 0.0
    %995 = vmatprep.subr.mxu0 0.0
    %996 = vmatpush1.xpose.msra.mxu0 0.0
    %997 = vmatprep.subr.mxu0 0.0
    %998 = vmatpush1.xpose.msra.mxu0 0.0
    %999 = vmatprep.subr.mxu0 0.0
    %1000 = vmatpush1.xpose.msra.mxu0 0.0
    %1001 = vmatprep.subr.mxu0 0.0
    %1002 = vmatpush1.xpose.msra.mxu0 0.0
    %1003 = vmatprep.subr.mxu0 0.0
    %1004 = vmatpush1.xpose.msra.mxu0 0.0
    %1005 = vmatprep.subr.mxu0 0.0
    %1006 = vmatpush1.xpose.msra.mxu0 0.0
    %1007 = vmatprep.subr.mxu0 0.0
    %1008 = vmatpush1.xpose.msra.mxu0 0.0
    %1009 = vmatprep.subr.mxu0 0.0
    %1010 = vmatpush1.xpose.msra.mxu0 0.0
    %1011 = vmatprep.subr.mxu0 0.0
    %1012 = vmatpush1.xpose.msra.mxu0 0.0
    %1013 = vmatprep.subr.mxu0 0.0
    %1014 = vmatpush1.xpose.msra.mxu0 0.0
    %1015 = vmatprep.subr.mxu0 0.0
    %1016 = vmatpush1.xpose.msra.mxu0 0.0
    %1017 = vmatprep.subr.mxu0 0.0
    %1018 = vmatpush1.xpose.msra.mxu0 0.0
    %1019 = vmatprep.subr.mxu0 0.0
    %1020 = vmatpush1.xpose.msra.mxu0 0.0
    %1021 = vmatprep.subr.mxu0 0.0
    %1022 = vmatpush1.xpose.msra.mxu0 0.0
    %1023 = vmatprep.subr.mxu0 0.0
    %1024 = vmatpush1.xpose.msra.mxu0 0.0
    %1025 = vmatprep.subr.mxu0 0.0
    %1026 = vmatpush1.xpose.msra.mxu0 0.0
    %1027 = vmatprep.subr.mxu0 0.0
    %1028 = vmatpush1.xpose.msra.mxu0 0.0
    %1029 = vmatprep.subr.mxu0 0.0
    %1030 = vmatpush1.xpose.msra.mxu0 0.0
    %1031 = vmatprep.subr.mxu0 0.0
    %1032 = vmatpush1.xpose.msra.mxu0 0.0
    %1033 = vmatprep.subr.mxu0 0.0
    %1034 = vmatpush1.xpose.msra.mxu0 0.0
    %1035 = vmatprep.subr.mxu0 0.0
    %1036 = vmatpush1.xpose.msra.mxu0 0.0
    %1037 = vmatprep.subr.mxu0 0.0
    %1038 = vmatpush1.xpose.msra.mxu0 0.0
    %1039 = vmatprep.subr.mxu0 0.0
    %1040 = vmatpush1.xpose.msra.mxu0 0.0
    %1041 = vmatprep.subr.mxu0 0.0
    %1042 = vmatpush1.xpose.msra.mxu0 0.0
    %1043 = vmatprep.subr.mxu0 0.0
    %1044 = vmatpush1.xpose.msra.mxu0 0.0
    %1045 = vmatprep.subr.mxu0 0.0
    %1046 = vmatpush1.xpose.msra.mxu0 0.0
    %1047 = vmatprep.subr.mxu0 0.0
    %1048 = vmatpush1.xpose.msra.mxu0 0.0
    %1049 = vmatprep.subr.mxu0 0.0
    %1050 = vmatpush1.xpose.msra.mxu0 0.0
    %1051 = vmatprep.mubr.f32.mxu0 0.0
    %1052 = vmatmul.mubr.f32.gmra.mrb[0].mxu0 %v985
    %v1053 = vpop.f32.mrb[0].mxu0
    %v1054 = vadd.f32 0.0, %v1053
    %v1055 = vpop.f32.mrb[0].mxu0
    %1056 = vdwg.mxu0
    %v1057 = vsel %vm970, %v1054, -inf
    %1058 = vmax.xlane.f32.xlu0 %v1057
    %v1059 = vpop.xlane.xlu0 %1058
    %v1060 = vsub.f32 %v1054, %v1059
    %v1061 = vmul.f32 %v1060, 1.442695
    %v1062 = vpow.pop %v1061
    %v1063 = vsel %vm970, %v1062, 0.0
    %1064 = vadd.xlane.f32.xlu0 %v1063
    %v1065 = vpop.xlane.xlu0 %1064
    %v1066 = vrcp.pop %v1065
    %v1067 = vmul.f32 %v1062, %v1066
    %1069 = vrot.lane.b32.xlu0 %v894, 120
    %v1070 = vpop.permute.xlu0 %1069
    %v1072 = vmul.f32 %v1067, %v1070
    %v1074 = vsel %vm970, %v982, 0
    %1076 = vmatprep.subr.mxu0 0.0
    %1077 = vmatpush1.msra.mxu0 %v15
    %1078 = vmatprep.subr.mxu0 0.0
    %1079 = vmatpush1.msra.mxu0 0.0
    %1080 = vmatprep.subr.mxu0 0.0
    %1081 = vmatpush1.msra.mxu0 0.0
    %1082 = vmatprep.subr.mxu0 0.0
    %1083 = vmatpush1.msra.mxu0 0.0
    %1084 = vmatprep.subr.mxu0 0.0
    %1085 = vmatpush1.msra.mxu0 0.0
    %1086 = vmatprep.subr.mxu0 0.0
    %1087 = vmatpush1.msra.mxu0 0.0
    %1088 = vmatprep.subr.mxu0 0.0
    %1089 = vmatpush1.msra.mxu0 0.0
    %1090 = vmatprep.subr.mxu0 0.0
    %1091 = vmatpush1.msra.mxu0 0.0
    %1092 = vmatprep.subr.mxu0 0.0
    %1093 = vmatpush1.msra.mxu0 0.0
    %1094 = vmatprep.subr.mxu0 0.0
    %1095 = vmatpush1.msra.mxu0 0.0
    %1096 = vmatprep.subr.mxu0 0.0
    %1097 = vmatpush1.msra.mxu0 0.0
    %1098 = vmatprep.subr.mxu0 0.0
    %1099 = vmatpush1.msra.mxu0 0.0
    %1100 = vmatprep.subr.mxu0 0.0
    %1101 = vmatpush1.msra.mxu0 0.0
    %1102 = vmatprep.subr.mxu0 0.0
    %1103 = vmatpush1.msra.mxu0 0.0
    %1104 = vmatprep.subr.mxu0 0.0
    %1105 = vmatpush1.msra.mxu0 0.0
    %1106 = vmatprep.subr.mxu0 0.0
    %1107 = vmatpush1.msra.mxu0 0.0
    %1108 = vmatprep.subr.mxu0 0.0
    %1109 = vmatpush1.msra.mxu0 0.0
    %1110 = vmatprep.subr.mxu0 0.0
    %1111 = vmatpush1.msra.mxu0 0.0
    %1112 = vmatprep.subr.mxu0 0.0
    %1113 = vmatpush1.msra.mxu0 0.0
    %1114 = vmatprep.subr.mxu0 0.0
    %1115 = vmatpush1.msra.mxu0 0.0
    %1116 = vmatprep.subr.mxu0 0.0
    %1117 = vmatpush1.msra.mxu0 0.0
    %1118 = vmatprep.subr.mxu0 0.0
    %1119 = vmatpush1.msra.mxu0 0.0
    %1120 = vmatprep.subr.mxu0 0.0
    %1121 = vmatpush1.msra.mxu0 0.0
    %1122 = vmatprep.subr.mxu0 0.0
    %1123 = vmatpush1.msra.mxu0 0.0
    %1124 = vmatprep.subr.mxu0 0.0
    %1125 = vmatpush1.msra.mxu0 0.0
    %1126 = vmatprep.subr.mxu0 0.0
    %1127 = vmatpush1.msra.mxu0 0.0
    %1128 = vmatprep.subr.mxu0 0.0
    %1129 = vmatpush1.msra.mxu0 0.0
    %1130 = vmatprep.subr.mxu0 0.0
    %1131 = vmatpush1.msra.mxu0 0.0
    %1132 = vmatprep.subr.mxu0 0.0
    %1133 = vmatpush1.msra.mxu0 0.0
    %1134 = vmatprep.subr.mxu0 0.0
    %1135 = vmatpush1.msra.mxu0 0.0
    %1136 = vmatprep.subr.mxu0 0.0
    %1137 = vmatpush1.msra.mxu0 0.0
    %1138 = vmatprep.subr.mxu0 0.0
    %1139 = vmatpush1.msra.mxu0 0.0
    %1140 = vmatprep.mubr.f32.mxu0 0.0
    %1141 = vmatmul.mubr.f32.gmra.mrb[0].mxu0 %v1074
    %v1142 = vpop.f32.mrb[0].mxu0
    %v1143 = vadd.f32 0.0, %v1142
    %v1144 = vpop.f32.mrb[0].mxu0
    %1145 = vdwg.mxu0
    %v1146 = vld [vmem:[%s1 + $0x40] sm:$0xff]
    %v1147 = vld [vmem:[%s1 + $0x50] sm:$0xff]
    %v1148 = vld [vmem:[%s2 + $0x10] ss:$0 sm:$0xff]
    %vm1149 = vcmask 39936
    %v1151 = vsel %vm1149, %v1143, 0
    %v1154 = vsel %vm1149, %v1146, 0
    %v1157 = vsel %vm1149, %v1147, 0
    %1159 = vmatprep.subr.mxu0 0.0
    %1160 = vmatpush1.xpose.msra.mxu0 %v1154
    %1161 = vmatprep.subr.mxu0 0.0
    %1162 = vmatpush1.xpose.msra.mxu0 %v1157
    %1163 = vmatprep.subr.mxu0 0.0
    %1164 = vmatpush1.xpose.msra.mxu0 0.0
    %1165 = vmatprep.subr.mxu0 0.0
    %1166 = vmatpush1.xpose.msra.mxu0 0.0
    %1167 = vmatprep.subr.mxu0 0.0
    %1168 = vmatpush1.xpose.msra.mxu0 0.0
    %1169 = vmatprep.subr.mxu0 0.0
    %1170 = vmatpush1.xpose.msra.mxu0 0.0
    %1171 = vmatprep.subr.mxu0 0.0
    %1172 = vmatpush1.xpose.msra.mxu0 0.0
    %1173 = vmatprep.subr.mxu0 0.0
    %1174 = vmatpush1.xpose.msra.mxu0 0.0
    %1175 = vmatprep.subr.mxu0 0.0
    %1176 = vmatpush1.xpose.msra.mxu0 0.0
    %1177 = vmatprep.subr.mxu0 0.0
    %1178 = vmatpush1.xpose.msra.mxu0 0.0
    %1179 = vmatprep.subr.mxu0 0.0
    %1180 = vmatpush1.xpose.msra.mxu0 0.0
    %1181 = vmatprep.subr.mxu0 0.0
    %1182 = vmatpush1.xpose.msra.mxu0 0.0
    %1183 = vmatprep.subr.mxu0 0.0
    %1184 = vmatpush1.xpose.msra.mxu0 0.0
    %1185 = vmatprep.subr.mxu0 0.0
    %1186 = vmatpush1.xpose.msra.mxu0 0.0
    %1187 = vmatprep.subr.mxu0 0.0
    %1188 = vmatpush1.xpose.msra.mxu0 0.0
    %1189 = vmatprep.subr.mxu0 0.0
    %1190 = vmatpush1.xpose.msra.mxu0 0.0
    %1191 = vmatprep.subr.mxu0 0.0
    %1192 = vmatpush1.xpose.msra.mxu0 0.0
    %1193 = vmatprep.subr.mxu0 0.0
    %1194 = vmatpush1.xpose.msra.mxu0 0.0
    %1195 = vmatprep.subr.mxu0 0.0
    %1196 = vmatpush1.xpose.msra.mxu0 0.0
    %1197 = vmatprep.subr.mxu0 0.0
    %1198 = vmatpush1.xpose.msra.mxu0 0.0
    %1199 = vmatprep.subr.mxu0 0.0
    %1200 = vmatpush1.xpose.msra.mxu0 0.0
    %1201 = vmatprep.subr.mxu0 0.0
    %1202 = vmatpush1.xpose.msra.mxu0 0.0
    %1203 = vmatprep.subr.mxu0 0.0
    %1204 = vmatpush1.xpose.msra.mxu0 0.0
    %1205 = vmatprep.subr.mxu0 0.0
    %1206 = vmatpush1.xpose.msra.mxu0 0.0
    %1207 = vmatprep.subr.mxu0 0.0
    %1208 = vmatpush1.xpose.msra.mxu0 0.0
    %1209 = vmatprep.subr.mxu0 0.0
    %1210 = vmatpush1.xpose.msra.mxu0 0.0
    %1211 = vmatprep.subr.mxu0 0.0
    %1212 = vmatpush1.xpose.msra.mxu0 0.0
    %1213 = vmatprep.subr.mxu0 0.0
    %1214 = vmatpush1.xpose.msra.mxu0 0.0
    %1215 = vmatprep.subr.mxu0 0.0
    %1216 = vmatpush1.xpose.msra.mxu0 0.0
    %1217 = vmatprep.subr.mxu0 0.0
    %1218 = vmatpush1.xpose.msra.mxu0 0.0
    %1219 = vmatprep.subr.mxu0 0.0
    %1220 = vmatpush1.xpose.msra.mxu0 0.0
    %1221 = vmatprep.subr.mxu0 0.0
    %1222 = vmatpush1.xpose.msra.mxu0 0.0
    %1223 = vmatprep.mubr.f32.mxu0 0.0
    %1224 = vmatmul.mubr.f32.gmra.mrb[0].mxu0 %v1151
    %v1225 = vpop.f32.mrb[0].mxu0
    %v1226 = vadd.f32 %v1148, %v1225
    %v1227 = vpop.f32.mrb[0].mxu0
    %1228 = vdwg.mxu0
    %v1229 = vsel %vm143, %v1226, 0.0
    %v1230 = vrot.slane %v1229, 4
    %v1231 = vadd.f32 %v1229, %v1230
    %v1232 = vrot.slane %v1231, 2
    %v1233 = vadd.f32 %v1231, %v1232
    %v1234 = vrot.slane %v1233, 1
    %v1235 = vadd.f32 %v1233, %v1234
    %v1236 = vrcp.pop 8.0
    %v1237 = vmul.f32 %v1235, %v1236
    %v1238 = vsub.f32 %v1226, %v1237
    %v1239 = vmul.f32 %v1238, %v1238
    %v1240 = vsel %vm143, %v1239, 0.0
    %v1241 = vrot.slane %v1240, 4
    %v1242 = vadd.f32 %v1240, %v1241
    %v1243 = vrot.slane %v1242, 2
    %v1244 = vadd.f32 %v1242, %v1243
    %v1245 = vrot.slane %v1244, 1
    %v1246 = vadd.f32 %v1244, %v1245
    %v1247 = vmul.f32 %v1246, %v1236
    %v1248 = vadd.f32 %v1247, 1e-05
    %v1249 = vrsqrt.pop %v1248
    %v1250 = vmul.f32 %v1238, %v1249
    %v1251 = vld [vmem:[%s2 + $0x20] ss:$0 sm:$0xff]
    %v1252 = vmul.f32 %v1250, %v1251
    %v1253 = vld [vmem:[%s2 + $0x30] ss:$0 sm:$0xff]
    %v1254 = vadd.f32 %v1252, %v1253
    %v1255 = vtanh.pop %v1254
    %v1257 = vsel %vm970, %v1072, 0
    %1259 = vmatprep.subr.mxu0 0.0
    %1260 = vmatpush1.msra.mxu0 %v1255
    %1261 = vmatprep.subr.mxu0 0.0
    %1262 = vmatpush1.msra.mxu0 0.0
    %1263 = vmatprep.subr.mxu0 0.0
    %1264 = vmatpush1.msra.mxu0 0.0
    %1265 = vmatprep.subr.mxu0 0.0
    %1266 = vmatpush1.msra.mxu0 0.0
    %1267 = vmatprep.subr.mxu0 0.0
    %1268 = vmatpush1.msra.mxu0 0.0
    %1269 = vmatprep.subr.mxu0 0.0
    %1270 = vmatpush1.msra.mxu0 0.0
    %1271 = vmatprep.subr.mxu0 0.0
    %1272 = vmatpush1.msra.mxu0 0.0
    %1273 = vmatprep.subr.mxu0 0.0
    %1274 = vmatpush1.msra.mxu0 0.0
    %1275 = vmatprep.subr.mxu0 0.0
    %1276 = vmatpush1.msra.mxu0 0.0
    %1277 = vmatprep.subr.mxu0 0.0
    %1278 = vmatpush1.msra.mxu0 0.0
    %1279 = vmatprep.subr.mxu0 0.0
    %1280 = vmatpush1.msra.mxu0 0.0
    %1281 = vmatprep.subr.mxu0 0.0
    %1282 = vmatpush1.msra.mxu0 0.0
    %1283 = vmatprep.subr.mxu0 0.0
    %1284 = vmatpush1.msra.mxu0 0.0
    %1285 = vmatprep.subr.mxu0 0.0
    %1286 = vmatpush1.msra.mxu0 0.0
    %1287 = vmatprep.subr.mxu0 0.0
    %1288 = vmatpush1.msra.mxu0 0.0
    %1289 = vmatprep.subr.mxu0 0.0
    %1290 = vmatpush1.msra.mxu0 0.0
    %1291 = vmatprep.subr.mxu0 0.0
    %1292 = vmatpush1.msra.mxu0 0.0
    %1293 = vmatprep.subr.mxu0 0.0
    %1294 = vmatpush1.msra.mxu0 0.0
    %1295 = vmatprep.subr.mxu0 0.0
    %1296 = vmatpush1.msra.mxu0 0.0
    %1297 = vmatprep.subr.mxu0 0.0
    %1298 = vmatpush1.msra.mxu0 0.0
    %1299 = vmatprep.subr.mxu0 0.0
    %1300 = vmatpush1.msra.mxu0 0.0
    %1301 = vmatprep.subr.mxu0 0.0
    %1302 = vmatpush1.msra.mxu0 0.0
    %1303 = vmatprep.subr.mxu0 0.0
    %1304 = vmatpush1.msra.mxu0 0.0
    %1305 = vmatprep.subr.mxu0 0.0
    %1306 = vmatpush1.msra.mxu0 0.0
    %1307 = vmatprep.subr.mxu0 0.0
    %1308 = vmatpush1.msra.mxu0 0.0
    %1309 = vmatprep.subr.mxu0 0.0
    %1310 = vmatpush1.msra.mxu0 0.0
    %1311 = vmatprep.subr.mxu0 0.0
    %1312 = vmatpush1.msra.mxu0 0.0
    %1313 = vmatprep.subr.mxu0 0.0
    %1314 = vmatpush1.msra.mxu0 0.0
    %1315 = vmatprep.subr.mxu0 0.0
    %1316 = vmatpush1.msra.mxu0 0.0
    %1317 = vmatprep.subr.mxu0 0.0
    %1318 = vmatpush1.msra.mxu0 0.0
    %1319 = vmatprep.subr.mxu0 0.0
    %1320 = vmatpush1.msra.mxu0 0.0
    %1321 = vmatprep.subr.mxu0 0.0
    %1322 = vmatpush1.msra.mxu0 0.0
    %1323 = vmatprep.mubr.f32.mxu0 0.0
    %1324 = vmatmul.mubr.f32.gmra.mrb[0].mxu0 %v1257
    %v1325 = vpop.f32.mrb[0].mxu0
    %v1326 = vadd.f32 0.0, %v1325
    %v1327 = vpop.f32.mrb[0].mxu0
    %1328 = vdwg.mxu0
    %v1329 = vld [vmem:[%s1 + $0x60] sm:$0xff]
    %v1330 = vld [vmem:[%s2 + $0x40] ss:$0 sm:$0xff]
    %v1332 = vsel %vm143, %v1326, 0
    %v1335 = vsel %vm143, %v1329, 0
    %1337 = vmatprep.subr.mxu0 0.0
    %1338 = vmatpush1.xpose.msra.mxu0 %v1335
    %1339 = vmatprep.subr.mxu0 0.0
    %1340 = vmatpush1.xpose.msra.mxu0 0.0
    %1341 = vmatprep.subr.mxu0 0.0
    %1342 = vmatpush1.xpose.msra.mxu0 0.0
    %1343 = vmatprep.subr.mxu0 0.0
    %1344 = vmatpush1.xpose.msra.mxu0 0.0
    %1345 = vmatprep.subr.mxu0 0.0
    %1346 = vmatpush1.xpose.msra.mxu0 0.0
    %1347 = vmatprep.subr.mxu0 0.0
    %1348 = vmatpush1.xpose.msra.mxu0 0.0
    %1349 = vmatprep.subr.mxu0 0.0
    %1350 = vmatpush1.xpose.msra.mxu0 0.0
    %1351 = vmatprep.subr.mxu0 0.0
    %1352 = vmatpush1.xpose.msra.mxu0 0.0
    %1353 = vmatprep.subr.mxu0 0.0
    %1354 = vmatpush1.xpose.msra.mxu0 0.0
    %1355 = vmatprep.subr.mxu0 0.0
    %1356 = vmatpush1.xpose.msra.mxu0 0.0
    %1357 = vmatprep.subr.mxu0 0.0
    %1358 = vmatpush1.xpose.msra.mxu0 0.0
    %1359 = vmatprep.subr.mxu0 0.0
    %1360 = vmatpush1.xpose.msra.mxu0 0.0
    %1361 = vmatprep.subr.mxu0 0.0
    %1362 = vmatpush1.xpose.msra.mxu0 0.0
    %1363 = vmatprep.subr.mxu0 0.0
    %1364 = vmatpush1.xpose.msra.mxu0 0.0
    %1365 = vmatprep.subr.mxu0 0.0
    %1366 = vmatpush1.xpose.msra.mxu0 0.0
    %1367 = vmatprep.subr.mxu0 0.0
    %1368 = vmatpush1.xpose.msra.mxu0 0.0
    %1369 = vmatprep.subr.mxu0 0.0
    %1370 = vmatpush1.xpose.msra.mxu0 0.0
    %1371 = vmatprep.subr.mxu0 0.0
    %1372 = vmatpush1.xpose.msra.mxu0 0.0
    %1373 = vmatprep.subr.mxu0 0.0
    %1374 = vmatpush1.xpose.msra.mxu0 0.0
    %1375 = vmatprep.subr.mxu0 0.0
    %1376 = vmatpush1.xpose.msra.mxu0 0.0
    %1377 = vmatprep.subr.mxu0 0.0
    %1378 = vmatpush1.xpose.msra.mxu0 0.0
    %1379 = vmatprep.subr.mxu0 0.0
    %1380 = vmatpush1.xpose.msra.mxu0 0.0
    %1381 = vmatprep.subr.mxu0 0.0
    %1382 = vmatpush1.xpose.msra.mxu0 0.0
    %1383 = vmatprep.subr.mxu0 0.0
    %1384 = vmatpush1.xpose.msra.mxu0 0.0
    %1385 = vmatprep.subr.mxu0 0.0
    %1386 = vmatpush1.xpose.msra.mxu0 0.0
    %1387 = vmatprep.subr.mxu0 0.0
    %1388 = vmatpush1.xpose.msra.mxu0 0.0
    %1389 = vmatprep.subr.mxu0 0.0
    %1390 = vmatpush1.xpose.msra.mxu0 0.0
    %1391 = vmatprep.subr.mxu0 0.0
    %1392 = vmatpush1.xpose.msra.mxu0 0.0
    %1393 = vmatprep.subr.mxu0 0.0
    %1394 = vmatpush1.xpose.msra.mxu0 0.0
    %1395 = vmatprep.subr.mxu0 0.0
    %1396 = vmatpush1.xpose.msra.mxu0 0.0
    %1397 = vmatprep.subr.mxu0 0.0
    %1398 = vmatpush1.xpose.msra.mxu0 0.0
    %1399 = vmatprep.subr.mxu0 0.0
    %1400 = vmatpush1.xpose.msra.mxu0 0.0
    %1401 = vmatprep.mubr.f32.mxu0 0.0
    %1402 = vmatmul.mubr.f32.gmra.mrb[0].mxu0 %v1332
    %v1403 = vpop.f32.mrb[0].mxu0
    %v1404 = vadd.f32 %v1330, %v1403
    %v1405 = vpop.f32.mrb[0].mxu0
    %1406 = vdwg.mxu0
    %v1407 = vsel %vm970, %v1404, 0.0
    %v1408 = vrot.slane %v1407, 4
    %v1409 = vadd.f32 %v1407, %v1408
    %v1410 = vrot.slane %v1409, 2
    %v1411 = vadd.f32 %v1409, %v1410
    %v1412 = vrot.slane %v1411, 1
    %v1413 = vadd.f32 %v1411, %v1412
    %v1414 = vmul.f32 %v1413, %v1236
    %v1415 = vsub.f32 %v1404, %v1414
    %v1416 = vmul.f32 %v1415, %v1415
    %v1417 = vsel %vm970, %v1416, 0.0
    %v1418 = vrot.slane %v1417, 4
    %v1419 = vadd.f32 %v1417, %v1418
    %v1420 = vrot.slane %v1419, 2
    %v1421 = vadd.f32 %v1419, %v1420
    %v1422 = vrot.slane %v1421, 1
    %v1423 = vadd.f32 %v1421, %v1422
    %v1424 = vmul.f32 %v1423, %v1236
    %v1425 = vadd.f32 %v1424, 1e-05
    %v1426 = vrsqrt.pop %v1425
    %v1427 = vmul.f32 %v1415, %v1426
    %v1428 = vld [vmem:[%s2 + $0x50] ss:$0 sm:$0xff]
    %v1429 = vmul.f32 %v1427, %v1428
    %v1430 = vld [vmem:[%s2 + $0x60] ss:$0 sm:$0xff]
    %v1431 = vadd.f32 %v1429, %v1430
    %v1432 = vtanh.pop %v1431
    %v1433 = vld [vmem:[%s1 + $0x70] sm:$0xff]
    %v1434 = vld [vmem:[%s1 + $0x80] sm:$0xff]
    %v1435 = vld [vmem:[%s1 + $0x90] sm:$0xff]
    %v1436 = vld [vmem:[%s1 + $0xa0] sm:$0xff]
    %v1437 = vld [vmem:[%s1 + $0xb0] sm:$0xff]
    %v1438 = vld [vmem:[%s1 + $0xc0] sm:$0xff]
    %v1439 = vld [vmem:[%s1 + $0xd0] sm:$0xff]
    %v1440 = vld [vmem:[%s1 + $0xe0] sm:$0xff]
    %v1442 = vsel %vm970, %v1432, 0
    %v1445 = vsel %vm970, %v1433, 0
    %v1448 = vsel %vm970, %v1434, 0
    %v1451 = vsel %vm970, %v1435, 0
    %v1454 = vsel %vm970, %v1436, 0
    %v1457 = vsel %vm970, %v1437, 0
    %v1460 = vsel %vm970, %v1438, 0
    %v1463 = vsel %vm970, %v1439, 0
    %v1466 = vsel %vm970, %v1440, 0
    %1468 = vmatprep.subr.mxu0 0.0
    %1469 = vmatpush1.xpose.msra.mxu0 %v1445
    %1470 = vmatprep.subr.mxu0 0.0
    %1471 = vmatpush1.xpose.msra.mxu0 %v1448
    %1472 = vmatprep.subr.mxu0 0.0
    %1473 = vmatpush1.xpose.msra.mxu0 %v1451
    %1474 = vmatprep.subr.mxu0 0.0
    %1475 = vmatpush1.xpose.msra.mxu0 %v1454
    %1476 = vmatprep.subr.mxu0 0.0
    %1477 = vmatpush1.xpose.msra.mxu0 %v1457
    %1478 = vmatprep.subr.mxu0 0.0
    %1479 = vmatpush1.xpose.msra.mxu0 %v1460
    %1480 = vmatprep.subr.mxu0 0.0
    %1481 = vmatpush1.xpose.msra.mxu0 %v1463
    %1482 = vmatprep.subr.mxu0 0.0
    %1483 = vmatpush1.xpose.msra.mxu0 %v1466
    %1484 = vmatprep.subr.mxu0 0.0
    %1485 = vmatpush1.xpose.msra.mxu0 0.0
    %1486 = vmatprep.subr.mxu0 0.0
    %1487 = vmatpush1.xpose.msra.mxu0 0.0
    %1488 = vmatprep.subr.mxu0 0.0
    %1489 = vmatpush1.xpose.msra.mxu0 0.0
    %1490 = vmatprep.subr.mxu0 0.0
    %1491 = vmatpush1.xpose.msra.mxu0 0.0
    %1492 = vmatprep.subr.mxu0 0.0
    %1493 = vmatpush1.xpose.msra.mxu0 0.0
    %1494 = vmatprep.subr.mxu0 0.0
    %1495 = vmatpush1.xpose.msra.mxu0 0.0
    %1496 = vmatprep.subr.mxu0 0.0
    %1497 = vmatpush1.xpose.msra.mxu0 0.0
    %1498 = vmatprep.subr.mxu0 0.0
    %1499 = vmatpush1.xpose.msra.mxu0 0.0
    %1500 = vmatprep.subr.mxu0 0.0
    %1501 = vmatpush1.xpose.msra.mxu0 0.0
    %1502 = vmatprep.subr.mxu0 0.0
    %1503 = vmatpush1.xpose.msra.mxu0 0.0
    %1504 = vmatprep.subr.mxu0 0.0
    %1505 = vmatpush1.xpose.msra.mxu0 0.0
    %1506 = vmatprep.subr.mxu0 0.0
    %1507 = vmatpush1.xpose.msra.mxu0 0.0
    %1508 = vmatprep.subr.mxu0 0.0
    %1509 = vmatpush1.xpose.msra.mxu0 0.0
    %1510 = vmatprep.subr.mxu0 0.0
    %1511 = vmatpush1.xpose.msra.mxu0 0.0
    %1512 = vmatprep.subr.mxu0 0.0
    %1513 = vmatpush1.xpose.msra.mxu0 0.0
    %1514 = vmatprep.subr.mxu0 0.0
    %1515 = vmatpush1.xpose.msra.mxu0 0.0
    %1516 = vmatprep.subr.mxu0 0.0
    %1517 = vmatpush1.xpose.msra.mxu0 0.0
    %1518 = vmatprep.subr.mxu0 0.0
    %1519 = vmatpush1.xpose.msra.mxu0 0.0
    %1520 = vmatprep.subr.mxu0 0.0
    %1521 = vmatpush1.xpose.msra.mxu0 0.0
    %1522 = vmatprep.subr.mxu0 0.0
    %1523 = vmatpush1.xpose.msra.mxu0 0.0
    %1524 = vmatprep.subr.mxu0 0.0
    %1525 = vmatpush1.xpose.msra.mxu0 0.0
    %1526 = vmatprep.subr.mxu0 0.0
    %1527 = vmatpush1.xpose.msra.mxu0 0.0
    %1528 = vmatprep.subr.mxu0 0.0
    %1529 = vmatpush1.xpose.msra.mxu0 0.0
    %1530 = vmatprep.subr.mxu0 0.0
    %1531 = vmatpush1.xpose.msra.mxu0 0.0
    %1532 = vmatprep.mubr.f32.mxu0 0.0
    %1533 = vmatmul.mubr.f32.gmra.mrb[0].mxu0 %v1442
    %v1534 = vpop.f32.mrb[0].mxu0
    %v1535 = vadd.f32 %v129, %v1534
    %v1536 = vpop.f32.mrb[0].mxu0
    %1537 = vdwg.mxu0
    %v1538 = vmul.f32 %v1535, 0.5
    %v1539 = vtanh.pop %v1538
    %v1540 = vadd.f32 %v1539, 1.0
    %v1541 = vmul.f32 %v1540, 0.5
    %v1542 = vtanh.pop %v1535
    %1543 = vrot.lane.b32.xlu0 %v15, 112
    %v1544 = vpop.permute.xlu0 %1543
    %v1546 = vmul.f32 %v1541, %v1544
    %1548 = vrot.lane.b32.xlu0 %v1542, 96
    %v1549 = vpop.permute.xlu0 %1548
    %v1551 = vmul.f32 %v1541, %v1549
    %1553 = vrot.lane.b32.xlu0 %v1551, 16
    %v1554 = vpop.permute.xlu0 %1553
    %v1556 = vadd.f32 %v1546, %v1554
    %v1557 = vtanh.pop %v1556
    %1559 = vrot.lane.b32.xlu0 %v1557, 32
    %v1560 = vpop.permute.xlu0 %1559
    %v1562 = vmul.f32 %v1541, %v1560
    %v1563 = vld [vmem:[%s1 + $0x170] sm:$0xff]
    %v1564 = vld [vmem:[%s1 + $0x180] sm:$0xff]
    %v1565 = vld [vmem:[%s1 + $0x190] sm:$0xff]
    %v1566 = vld [vmem:[%s1 + $0x1a0] sm:$0xff]
    %v1567 = vld [vmem:[%s1 + $0x1b0] sm:$0xff]
    %v1568 = vld [vmem:[%s1 + $0x1c0] sm:$0xff]
    %v1569 = vld [vmem:[%s1 + $0x1d0] sm:$0xff]
    %v1570 = vld [vmem:[%s1 + $0x1e0] sm:$0xff]
    %1572 = vrot.lane.b32.xlu0 %v1562, 80
    %v1573 = vpop.permute.xlu0 %1572
    %v1574 = vsel %vm143, %v1573, 0
    %v1577 = vsel %vm143, %v1563, 0
    %v1580 = vsel %vm143, %v1564, 0
    %v1583 = vsel %vm143, %v1565, 0
    %v1586 = vsel %vm143, %v1566, 0
    %v1589 = vsel %vm143, %v1567, 0
    %v1592 = vsel %vm143, %v1568, 0
    %v1595 = vsel %vm143, %v1569, 0
    %v1598 = vsel %vm143, %v1570, 0
    %1600 = vmatprep.subr.mxu0 0.0
    %1601 = vmatpush1.xpose.msra.mxu0 %v1577
    %1602 = vmatprep.subr.mxu0 0.0
    %1603 = vmatpush1.xpose.msra.mxu0 %v1580
    %1604 = vmatprep.subr.mxu0 0.0
    %1605 = vmatpush1.xpose.msra.mxu0 %v1583
    %1606 = vmatprep.subr.mxu0 0.0
    %1607 = vmatpush1.xpose.msra.mxu0 %v1586
    %1608 = vmatprep.subr.mxu0 0.0
    %1609 = vmatpush1.xpose.msra.mxu0 %v1589
    %1610 = vmatprep.subr.mxu0 0.0
    %1611 = vmatpush1.xpose.msra.mxu0 %v1592
    %1612 = vmatprep.subr.mxu0 0.0
    %1613 = vmatpush1.xpose.msra.mxu0 %v1595
    %1614 = vmatprep.subr.mxu0 0.0
    %1615 = vmatpush1.xpose.msra.mxu0 %v1598
    %1616 = vmatprep.subr.mxu0 0.0
    %1617 = vmatpush1.xpose.msra.mxu0 0.0
    %1618 = vmatprep.subr.mxu0 0.0
    %1619 = vmatpush1.xpose.msra.mxu0 0.0
    %1620 = vmatprep.subr.mxu0 0.0
    %1621 = vmatpush1.xpose.msra.mxu0 0.0
    %1622 = vmatprep.subr.mxu0 0.0
    %1623 = vmatpush1.xpose.msra.mxu0 0.0
    %1624 = vmatprep.subr.mxu0 0.0
    %1625 = vmatpush1.xpose.msra.mxu0 0.0
    %1626 = vmatprep.subr.mxu0 0.0
    %1627 = vmatpush1.xpose.msra.mxu0 0.0
    %1628 = vmatprep.subr.mxu0 0.0
    %1629 = vmatpush1.xpose.msra.mxu0 0.0
    %1630 = vmatprep.subr.mxu0 0.0
    %1631 = vmatpush1.xpose.msra.mxu0 0.0
    %1632 = vmatprep.subr.mxu0 0.0
    %1633 = vmatpush1.xpose.msra.mxu0 0.0
    %1634 = vmatprep.subr.mxu0 0.0
    %1635 = vmatpush1.xpose.msra.mxu0 0.0
    %1636 = vmatprep.subr.mxu0 0.0
    %1637 = vmatpush1.xpose.msra.mxu0 0.0
    %1638 = vmatprep.subr.mxu0 0.0
    %1639 = vmatpush1.xpose.msra.mxu0 0.0
    %1640 = vmatprep.subr.mxu0 0.0
    %1641 = vmatpush1.xpose.msra.mxu0 0.0
    %1642 = vmatprep.subr.mxu0 0.0
    %1643 = vmatpush1.xpose.msra.mxu0 0.0
    %1644 = vmatprep.subr.mxu0 0.0
    %1645 = vmatpush1.xpose.msra.mxu0 0.0
    %1646 = vmatprep.subr.mxu0 0.0
    %1647 = vmatpush1.xpose.msra.mxu0 0.0
    %1648 = vmatprep.subr.mxu0 0.0
    %1649 = vmatpush1.xpose.msra.mxu0 0.0
    %1650 = vmatprep.subr.mxu0 0.0
    %1651 = vmatpush1.xpose.msra.mxu0 0.0
    %1652 = vmatprep.subr.mxu0 0.0
    %1653 = vmatpush1.xpose.msra.mxu0 0.0
    %1654 = vmatprep.subr.mxu0 0.0
    %1655 = vmatpush1.xpose.msra.mxu0 0.0
    %1656 = vmatprep.subr.mxu0 0.0
    %1657 = vmatpush1.xpose.msra.mxu0 0.0
    %1658 = vmatprep.subr.mxu0 0.0
    %1659 = vmatpush1.xpose.msra.mxu0 0.0
    %1660 = vmatprep.subr.mxu0 0.0
    %1661 = vmatpush1.xpose.msra.mxu0 0.0
    %1662 = vmatprep.subr.mxu0 0.0
    %1663 = vmatpush1.xpose.msra.mxu0 0.0
    %1664 = vmatprep.mubr.f32.mxu0 0.0
    %1665 = vmatmul.mubr.f32.gmra.mrb[0].mxu0 %v1574
    %v1666 = vpop.f32.mrb[0].mxu0
    %v1667 = vadd.f32 %v237, %v1666
    %v1668 = vpop.f32.mrb[0].mxu0
    %1669 = vdwg.mxu0
    %v1670 = vmul.f32 %v1667, 0.5
    %v1671 = vtanh.pop %v1670
    %v1672 = vadd.f32 %v1671, 1.0
    %v1673 = vmul.f32 %v1672, 0.5
    %v1674 = vtanh.pop %v1667
    %v1676 = vmul.f32 %v1673, %v142
    %1678 = vrot.lane.b32.xlu0 %v1674, 96
    %v1679 = vpop.permute.xlu0 %1678
    %v1681 = vmul.f32 %v1673, %v1679
    %1683 = vrot.lane.b32.xlu0 %v1681, 16
    %v1684 = vpop.permute.xlu0 %1683
    %v1686 = vadd.f32 %v1676, %v1684
    %v1687 = vtanh.pop %v1686
    %1689 = vrot.lane.b32.xlu0 %v1687, 32
    %v1690 = vpop.permute.xlu0 %1689
    %v1692 = vmul.f32 %v1673, %v1690
    %v1693 = vmax.f32 %v1692, 0.0
    %v1694 = vld [vmem:[%s1 + $0x270] sm:$0xff]
    %v1695 = vld [vmem:[%s2 + $0x90] ss:$0 sm:$0xff]
    %1697 = vrot.lane.b32.xlu0 %v1693, 80
    %v1698 = vpop.permute.xlu0 %1697
    %v1699 = vsel %vm143, %v1698, 0
    %v1702 = vsel %vm143, %v1694, 0
    %1704 = vmatprep.subr.mxu0 0.0
    %1705 = vmatpush1.xpose.msra.mxu0 %v1702
    %1706 = vmatprep.subr.mxu0 0.0
    %1707 = vmatpush1.xpose.msra.mxu0 0.0
    %1708 = vmatprep.subr.mxu0 0.0
    %1709 = vmatpush1.xpose.msra.mxu0 0.0
    %1710 = vmatprep.subr.mxu0 0.0
    %1711 = vmatpush1.xpose.msra.mxu0 0.0
    %1712 = vmatprep.subr.mxu0 0.0
    %1713 = vmatpush1.xpose.msra.mxu0 0.0
    %1714 = vmatprep.subr.mxu0 0.0
    %1715 = vmatpush1.xpose.msra.mxu0 0.0
    %1716 = vmatprep.subr.mxu0 0.0
    %1717 = vmatpush1.xpose.msra.mxu0 0.0
    %1718 = vmatprep.subr.mxu0 0.0
    %1719 = vmatpush1.xpose.msra.mxu0 0.0
    %1720 = vmatprep.subr.mxu0 0.0
    %1721 = vmatpush1.xpose.msra.mxu0 0.0
    %1722 = vmatprep.subr.mxu0 0.0
    %1723 = vmatpush1.xpose.msra.mxu0 0.0
    %1724 = vmatprep.subr.mxu0 0.0
    %1725 = vmatpush1.xpose.msra.mxu0 0.0
    %1726 = vmatprep.subr.mxu0 0.0
    %1727 = vmatpush1.xpose.msra.mxu0 0.0
    %1728 = vmatprep.subr.mxu0 0.0
    %1729 = vmatpush1.xpose.msra.mxu0 0.0
    %1730 = vmatprep.subr.mxu0 0.0
    %1731 = vmatpush1.xpose.msra.mxu0 0.0
    %1732 = vmatprep.subr.mxu0 0.0
    %1733 = vmatpush1.xpose.msra.mxu0 0.0
    %1734 = vmatprep.subr.mxu0 0.0
    %1735 = vmatpush1.xpose.msra.mxu0 0.0
    %1736 = vmatprep.subr.mxu0 0.0
    %1737 = vmatpush1.xpose.msra.mxu0 0.0
    %1738 = vmatprep.subr.mxu0 0.0
    %1739 = vmatpush1.xpose.msra.mxu0 0.0
    %1740 = vmatprep.subr.mxu0 0.0
    %1741 = vmatpush1.xpose.msra.mxu0 0.0
    %1742 = vmatprep.subr.mxu0 0.0
    %1743 = vmatpush1.xpose.msra.mxu0 0.0
    %1744 = vmatprep.subr.mxu0 0.0
    %1745 = vmatpush1.xpose.msra.mxu0 0.0
    %1746 = vmatprep.subr.mxu0 0.0
    %1747 = vmatpush1.xpose.msra.mxu0 0.0
    %1748 = vmatprep.subr.mxu0 0.0
    %1749 = vmatpush1.xpose.msra.mxu0 0.0
    %1750 = vmatprep.subr.mxu0 0.0
    %1751 = vmatpush1.xpose.msra.mxu0 0.0
    %1752 = vmatprep.subr.mxu0 0.0
    %1753 = vmatpush1.xpose.msra.mxu0 0.0
    %1754 = vmatprep.subr.mxu0 0.0
    %1755 = vmatpush1.xpose.msra.mxu0 0.0
    %1756 = vmatprep.subr.mxu0 0.0
    %1757 = vmatpush1.xpose.msra.mxu0 0.0
    %1758 = vmatprep.subr.mxu0 0.0
    %1759 = vmatpush1.xpose.msra.mxu0 0.0
    %1760 = vmatprep.subr.mxu0 0.0
    %1761 = vmatpush1.xpose.msra.mxu0 0.0
    %1762 = vmatprep.subr.mxu0 0.0
    %1763 = vmatpush1.xpose.msra.mxu0 0.0
    %1764 = vmatprep.subr.mxu0 0.0
    %1765 = vmatpush1.xpose.msra.mxu0 0.0
    %1766 = vmatprep.subr.mxu0 0.0
    %1767 = vmatpush1.xpose.msra.mxu0 0.0
    %1768 = vmatprep.mubr.f32.mxu0 0.0
    %1769 = vmatmul.mubr.f32.gmra.mrb[0].mxu0 %v1699
    %v1770 = vpop.f32.mrb[0].mxu0
    %v1771 = vadd.f32 %v1695, %v1770
    %v1772 = vpop.f32.mrb[0].mxu0
    %1773 = vdwg.mxu0
    %v1774 = vmax.f32 %v1771, 0.0
    %1775 = vst.msk [vmem:[#allocation2] sm:$0xff] %vm970, %v1774
    // Predicated region
    $region14: #{scalenet_forward.1} parent=1 // pred_check
      _
    $region15: #{scalenet_forward.1} parent=1 // pred_check_branch
      %1777 = sbr.rel (0) target = $region17
    $region16: #{scalenet_forward.1} parent=1 // pred_region
      %s1779 = ssub.s32 128, 128
      %1780 = vsyncadd [#allocation3], %s1779
      %s1782 = sshll.u32 [#allocation2], 4
      %s1783 = int_to_ptr.vmem [resolvable:$true] %s1782
      %1785 = dma.vmem_to_hbm [thread:$0]  %s1783, 128, %s3, [#allocation3]
    $region17: #{scalenet_forward.1} parent=1 // pred_fallthru
      _
    // Predicated region
    $region18: #{scalenet_forward.1} parent=1 // pred_check
      _
    $region19: #{scalenet_forward.1} parent=1 // pred_check_branch
      %1787 = sbr.rel (0) target = $region21
    $region20: #{scalenet_forward.1} parent=1 // pred_region
      %1788 = dma.done [#allocation3], 128
    $region21: #{scalenet_forward.1} parent=1 // pred_fallthru
      _
    %1789 = vsyncpa [#allocation3], 1

</llo_original>
